<compile_context>
chip_gen: v6e
topology: v6e:2x2x1
jax: 0.10.0
libtpu: 0.0.40
codegen_flags: <defaults>
</compile_context>

<pallas_src>
import jax
import jax.numpy as jnp
from jax import lax
from jax.experimental import pallas as pl
from jax.experimental.pallas import tpu as pltpu

N_CLASS = 128    # vocab size (== N_HIDDEN, see NOTE above)
N_HIDDEN = 128
T_ENC = 8        # encoder sequence length
T_DEC = 8        # decoder sequence length
ATTN_PAD = 128   # lane-dense width of the attention-weights output


def attention_kernel(enc_x_ref, dec_x_ref, h0_ref,
                     enc_wih_ref, enc_whh_ref, enc_b_ref,
                     dec_wih_ref, dec_whh_ref, dec_b_ref,
                     attn_w_ref, attn_b_ref,
                     out_wh_ref, out_wc_ref, out_b_ref,
                     out_ref, attn_out_ref,
                     enc_out_sc, dec_h_sc):
    t_enc = enc_x_ref.shape[0]
    t_dec = dec_x_ref.shape[0]

    # ---- hoisted input projections: two batched [T,C]x[C,H] bf16 matmuls ----
    enc_xw = (jnp.dot(enc_x_ref[...], enc_wih_ref[...],
                      preferred_element_type=jnp.float32) + enc_b_ref[...])
    dec_xw = (jnp.dot(dec_x_ref[...], dec_wih_ref[...],
                      preferred_element_type=jnp.float32) + dec_b_ref[...])

    # ---- encoder recurrence: one MXU push per step, h carried in vregs -----
    # Only the encoder W_hh (8 bf16 vregs) is held resident here.
    enc_whh = enc_whh_ref[...]
    h = h0_ref[...]                                            # [1, H] float32
    for t in range(t_enc):                                     # static T=8, fully unrolled
        h = jnp.tanh(enc_xw[t:t + 1, :]
                     + jnp.dot(h.astype(jnp.bfloat16), enc_whh,
                               preferred_element_type=jnp.float32))
        enc_out_sc[pl.ds(t, 1), :] = h                         # lane-dense [1, H] store

    # ---- decoder recurrence (starts from encoder final hidden) -------------
    # dec_whh loaded only now, keeping vreg pressure low through the encoder.
    dec_whh = dec_whh_ref[...]
    for t in range(t_dec):
        h = jnp.tanh(dec_xw[t:t + 1, :]
                     + jnp.dot(h.astype(jnp.bfloat16), dec_whh,
                               preferred_element_type=jnp.float32))
        dec_h_sc[pl.ds(t, 1), :] = h

    # ---- batched attention + output epilogue --------------------------------
    enc_outs = enc_out_sc[...]                                 # [T_enc, H] f32
    dec_h = dec_h_sc[...]                                      # [T_dec, H] f32
    enc_outs_bf = enc_outs.astype(jnp.bfloat16)
    dec_h_bf = dec_h.astype(jnp.bfloat16)

    # attn(enc_outputs) for all encoder steps at once: [T_enc, H]
    enc_attn = (jnp.dot(enc_outs_bf, attn_w_ref[...],
                        preferred_element_type=jnp.float32) + attn_b_ref[...])

    # scores[t, j] = dec_h[t] . enc_attn[j]   (contract over H, no transpose)
    scores = lax.dot_general(dec_h_bf, enc_attn.astype(jnp.bfloat16),
                             dimension_numbers=(((1,), (1,)), ((), ())),
                             preferred_element_type=jnp.float32)  # [T_dec, T_enc]
    scores = scores - jnp.max(scores, axis=-1, keepdims=True)
    e = jnp.exp(scores)
    w = e * pl.reciprocal(jnp.sum(e, axis=-1, keepdims=True), approx=True)

    # Lane-dense attention output: full [T_dec, 128] block store; the wrapper
    # slices back to [T_dec, T_enc].
    pad = attn_out_ref.shape[1] - t_enc
    attn_out_ref[...] = jnp.concatenate(
        [w, jnp.zeros((t_dec, pad), jnp.float32)], axis=1)

    # context_t = w_t @ enc_outs : [T_dec, H]
    ctx = jnp.dot(w.astype(jnp.bfloat16), enc_outs_bf,
                  preferred_element_type=jnp.float32)

    # Split output projection (no 256-lane concat):
    #   out(cat(dec_output, context)) == dec_h @ W_h + ctx @ W_c + b
    y = (jnp.dot(dec_h_bf, out_wh_ref[...], preferred_element_type=jnp.float32)
         + jnp.dot(ctx.astype(jnp.bfloat16), out_wc_ref[...],
                   preferred_element_type=jnp.float32)
         + out_b_ref[...])
    out_ref[...] = y.astype(out_ref.dtype)                     # single full-block store


def attention_forward(params, enc_inputs, hidden, dec_inputs):
    """enc_inputs: [1, T_enc, n_class], hidden: [1, 1, n_hidden],
    dec_inputs: [1, T_dec, n_class].
    Returns (outputs [T_dec, n_class], trained_attn [T_dec, T_enc])."""
    enc_x = jnp.transpose(enc_inputs, (1, 0, 2))[:, 0, :].astype(jnp.bfloat16)
    dec_x = jnp.transpose(dec_inputs, (1, 0, 2))[:, 0, :].astype(jnp.bfloat16)
    h0 = hidden[0]                                             # [1, n_hidden] f32

    t_enc = enc_x.shape[0]
    t_dec = dec_x.shape[0]
    n_hidden = h0.shape[1]

    (enc_wih, enc_whh, enc_b, dec_wih, dec_whh, dec_b,
     attn_w, attn_b, out_wh, out_wc, out_b) = params
    n_class = out_b.shape[1]

    vspec = pl.BlockSpec(memory_space=pltpu.MemorySpace.VMEM)
    out_shapes = (jax.ShapeDtypeStruct((t_dec, n_class), jnp.float32),
                  jax.ShapeDtypeStruct((t_dec, ATTN_PAD), jnp.float32))

    outputs, attn_padded = pl.pallas_call(
        attention_kernel,
        out_shape=out_shapes,
        in_specs=[vspec] * 14,
        out_specs=(vspec, vspec),
        scratch_shapes=[pltpu.VMEM((t_enc, n_hidden), jnp.float32),   # encoder outputs
                        pltpu.VMEM((t_dec, n_hidden), jnp.float32)],  # decoder hiddens
    )(enc_x, dec_x, h0,
      enc_wih, enc_whh, enc_b,
      dec_wih, dec_whh, dec_b,
      attn_w, attn_b, out_wh, out_wc, out_b)
    return outputs, attn_padded[:, :t_enc]


def init_params(key, n_class, n_hidden):
    ks = jax.random.split(key, 12)
    s = 0.1
    # PyTorch layouts: RNN W_ih [H, C], W_hh [H, H], b_ih/b_hh [H];
    # Linear attn W [H, H], b [H]; Linear out W [H, 2H], b [H].
    enc_w_ih = s * jax.random.normal(ks[0], (n_hidden, n_class), jnp.float32)
    enc_w_hh = s * jax.random.normal(ks[1], (n_hidden, n_hidden), jnp.float32)
    enc_b_ih = s * jax.random.normal(ks[2], (n_hidden,), jnp.float32)
    enc_b_hh = s * jax.random.normal(ks[3], (n_hidden,), jnp.float32)
    dec_w_ih = s * jax.random.normal(ks[4], (n_hidden, n_class), jnp.float32)
    dec_w_hh = s * jax.random.normal(ks[5], (n_hidden, n_hidden), jnp.float32)
    dec_b_ih = s * jax.random.normal(ks[6], (n_hidden,), jnp.float32)
    dec_b_hh = s * jax.random.normal(ks[7], (n_hidden,), jnp.float32)
    attn_w = s * jax.random.normal(ks[8], (n_hidden, n_hidden), jnp.float32)
    attn_b = s * jax.random.normal(ks[9], (n_hidden,), jnp.float32)
    out_w = s * jax.random.normal(ks[10], (n_hidden, 2 * n_hidden), jnp.float32)
    out_b = s * jax.random.normal(ks[11], (n_hidden,), jnp.float32)

    # Pre-transpose to [in, out] for the kernel, fold RNN biases, store matmul
    # weights in bf16 (MXU operands, halves weight DMA), biases in f32.
    # out projection is split: rows 0..H-1 multiply dec_output, rows H..2H-1
    # multiply context (matches the torch.cat order).
    out_wT = out_w.T                                            # [2H, H]
    return (enc_w_ih.T.astype(jnp.bfloat16), enc_w_hh.T.astype(jnp.bfloat16),
            (enc_b_ih + enc_b_hh)[None, :],
            dec_w_ih.T.astype(jnp.bfloat16), dec_w_hh.T.astype(jnp.bfloat16),
            (dec_b_ih + dec_b_hh)[None, :],
            attn_w.T.astype(jnp.bfloat16), attn_b[None, :],
            out_wT[:n_hidden].astype(jnp.bfloat16),
            out_wT[n_hidden:].astype(jnp.bfloat16),
            out_b[None, :])


def reference_forward(params, enc_inputs, hidden, dec_inputs):
    """Pure-JAX f32 reference mirroring the PyTorch forward, for validation.
    Uses the same parameter values as the kernel (bf16 weights upcast)."""
    (enc_wih, enc_whh, enc_b, dec_wih, dec_whh, dec_b,
     attn_w, attn_b, out_wh, out_wc, out_b) = [
        p.astype(jnp.float32) for p in params]
    enc_x = jnp.transpose(enc_inputs, (1, 0, 2))[:, 0, :]
    dec_x = jnp.transpose(dec_inputs, (1, 0, 2))[:, 0, :]
    h = hidden[0]
    enc_outs = []
    for t in range(enc_x.shape[0]):
        h = jnp.tanh(enc_x[t:t + 1] @ enc_wih + h @ enc_whh + enc_b)
        enc_outs.append(h)
    enc_outs = jnp.concatenate(enc_outs, axis=0)
    enc_attn = enc_outs @ attn_w + attn_b
    outs, attns = [], []
    for t in range(dec_x.shape[0]):
        h = jnp.tanh(dec_x[t:t + 1] @ dec_wih + h @ dec_whh + dec_b)
        scores = h @ enc_attn.T
        w = jax.nn.softmax(scores, axis=-1)
        ctx = w @ enc_outs
        outs.append(h @ out_wh + ctx @ out_wc + out_b)
        attns.append(w)
    return jnp.concatenate(outs, axis=0), jnp.concatenate(attns, axis=0)


if __name__ == "__main__":
    key = jax.random.PRNGKey(0)
    k_params, k_enc, k_dec, k_h = jax.random.split(key, 4)

    params = init_params(k_params, N_CLASS, N_HIDDEN)

    # batch=1 is hard-coded by the module's forward (outputs buffer [n_step, 1, n_class])
    enc_inputs = jax.random.normal(k_enc, (1, T_ENC, N_CLASS), jnp.float32)
    dec_inputs = jax.random.normal(k_dec, (1, T_DEC, N_CLASS), jnp.float32)
    hidden = jax.random.normal(k_h, (1, 1, N_HIDDEN), jnp.float32)

    outputs, trained_attn = attention_forward(params, enc_inputs, hidden, dec_inputs)
    jax.block_until_ready((outputs, trained_attn))

    ref_out, ref_attn = reference_forward(params, enc_inputs, hidden, dec_inputs)
    assert outputs.shape == (T_DEC, N_CLASS)
    assert trained_attn.shape == (T_DEC, T_ENC)
    # bf16 MXU operands (with f32 accumulation) introduce ~1e-2-level deltas
    # vs. the pure-f32 reference, hence the relaxed tolerance.
    assert jnp.allclose(outputs, ref_out, atol=5e-2, rtol=5e-2)
    assert jnp.allclose(trained_attn, ref_attn, atol=5e-2, rtol=5e-2)

    print("KERNEL_OK")
</pallas_src>

<mosaic_0001>
module attributes {stable_mosaic.version = 11 : i64} {
  func.func @attention_kernel(%arg0: memref<8x128xbf16, #tpu.memory_space<vmem>>, %arg1: memref<8x128xbf16, #tpu.memory_space<vmem>>, %arg2: memref<1x128xf32, #tpu.memory_space<vmem>>, %arg3: memref<128x128xbf16, #tpu.memory_space<vmem>>, %arg4: memref<128x128xbf16, #tpu.memory_space<vmem>>, %arg5: memref<1x128xf32, #tpu.memory_space<vmem>>, %arg6: memref<128x128xbf16, #tpu.memory_space<vmem>>, %arg7: memref<128x128xbf16, #tpu.memory_space<vmem>>, %arg8: memref<1x128xf32, #tpu.memory_space<vmem>>, %arg9: memref<128x128xbf16, #tpu.memory_space<vmem>>, %arg10: memref<1x128xf32, #tpu.memory_space<vmem>>, %arg11: memref<128x128xbf16, #tpu.memory_space<vmem>>, %arg12: memref<128x128xbf16, #tpu.memory_space<vmem>>, %arg13: memref<1x128xf32, #tpu.memory_space<vmem>>, %arg14: memref<8x128xf32, #tpu.memory_space<vmem>>, %arg15: memref<8x128xf32, #tpu.memory_space<vmem>>, %arg16: memref<8x128xf32, #tpu.memory_space<vmem>>, %arg17: memref<8x128xf32, #tpu.memory_space<vmem>>) attributes {dimension_semantics = [], scalar_prefetch = 0 : i64, scratch_operands = 2 : i64, tpu.core_type = #tpu.core_type<tc>} {
    %c0 = arith.constant 0 : index
    %c0_0 = arith.constant 0 : index
    %0 = vector.load %arg0[%c0, %c0_0] : memref<8x128xbf16, #tpu.memory_space<vmem>>, vector<8x128xbf16>
    %c0_1 = arith.constant 0 : index
    %c0_2 = arith.constant 0 : index
    %1 = vector.load %arg3[%c0_1, %c0_2] : memref<128x128xbf16, #tpu.memory_space<vmem>>, vector<128x128xbf16>
    %cst = arith.constant dense<0.000000e+00> : vector<8x128xf32>
    %2 = tpu.matmul %0, %1, %cst {dimension_numbers = #tpu.dot_dimension_numbers<[1], [0], [0], [1], [0, 0, 1, 1], [], []>} : vector<8x128xbf16>, vector<128x128xbf16>, vector<8x128xf32> -> vector<8x128xf32>
    %c0_3 = arith.constant 0 : index
    %c0_4 = arith.constant 0 : index
    %3 = vector.load %arg5[%c0_3, %c0_4] : memref<1x128xf32, #tpu.memory_space<vmem>>, vector<1x128xf32>
    %4 = vector.broadcast %3 : vector<1x128xf32> to vector<8x128xf32>
    %5 = arith.addf %2, %4 : vector<8x128xf32>
    %c0_5 = arith.constant 0 : index
    %c0_6 = arith.constant 0 : index
    %6 = vector.load %arg1[%c0_5, %c0_6] : memref<8x128xbf16, #tpu.memory_space<vmem>>, vector<8x128xbf16>
    %c0_7 = arith.constant 0 : index
    %c0_8 = arith.constant 0 : index
    %7 = vector.load %arg6[%c0_7, %c0_8] : memref<128x128xbf16, #tpu.memory_space<vmem>>, vector<128x128xbf16>
    %cst_9 = arith.constant dense<0.000000e+00> : vector<8x128xf32>
    %8 = tpu.matmul %6, %7, %cst_9 {dimension_numbers = #tpu.dot_dimension_numbers<[1], [0], [0], [1], [0, 0, 1, 1], [], []>} : vector<8x128xbf16>, vector<128x128xbf16>, vector<8x128xf32> -> vector<8x128xf32>
    %c0_10 = arith.constant 0 : index
    %c0_11 = arith.constant 0 : index
    %9 = vector.load %arg8[%c0_10, %c0_11] : memref<1x128xf32, #tpu.memory_space<vmem>>, vector<1x128xf32>
    %10 = vector.broadcast %9 : vector<1x128xf32> to vector<8x128xf32>
    %11 = arith.addf %8, %10 : vector<8x128xf32>
    %c0_12 = arith.constant 0 : index
    %c0_13 = arith.constant 0 : index
    %12 = vector.load %arg4[%c0_12, %c0_13] : memref<128x128xbf16, #tpu.memory_space<vmem>>, vector<128x128xbf16>
    %c0_14 = arith.constant 0 : index
    %c0_15 = arith.constant 0 : index
    %13 = vector.load %arg2[%c0_14, %c0_15] : memref<1x128xf32, #tpu.memory_space<vmem>>, vector<1x128xf32>
    %14 = vector.extract_strided_slice %5 {offsets = [0, 0], sizes = [1, 128], strides = [1, 1]} : vector<8x128xf32> to vector<1x128xf32>
    %15 = arith.truncf %13 : vector<1x128xf32> to vector<1x128xbf16>
    %cst_16 = arith.constant dense<0.000000e+00> : vector<1x128xf32>
    %16 = tpu.matmul %15, %12, %cst_16 {dimension_numbers = #tpu.dot_dimension_numbers<[1], [0], [0], [1], [0, 0, 1, 1], [], []>} : vector<1x128xbf16>, vector<128x128xbf16>, vector<1x128xf32> -> vector<1x128xf32>
    %17 = arith.addf %14, %16 : vector<1x128xf32>
    %18 = math.tanh %17 : vector<1x128xf32>
    %c0_17 = arith.constant 0 : index
    %c0_18 = arith.constant 0 : index
    %19 = vector.load %arg16[%c0_17, %c0_18] : memref<8x128xf32, #tpu.memory_space<vmem>>, vector<1x128xf32>
    tpu.vector_store %arg16[%c0_17, %c0_18], %18 {strides = array<i32>} : memref<8x128xf32, #tpu.memory_space<vmem>>, vector<1x128xf32>,
    %20 = vector.extract_strided_slice %5 {offsets = [1, 0], sizes = [1, 128], strides = [1, 1]} : vector<8x128xf32> to vector<1x128xf32>
    %21 = arith.truncf %18 : vector<1x128xf32> to vector<1x128xbf16>
    %cst_19 = arith.constant dense<0.000000e+00> : vector<1x128xf32>
    %22 = tpu.matmul %21, %12, %cst_19 {dimension_numbers = #tpu.dot_dimension_numbers<[1], [0], [0], [1], [0, 0, 1, 1], [], []>} : vector<1x128xbf16>, vector<128x128xbf16>, vector<1x128xf32> -> vector<1x128xf32>
    %23 = arith.addf %20, %22 : vector<1x128xf32>
    %24 = math.tanh %23 : vector<1x128xf32>
    %c1 = arith.constant 1 : index
    %c0_20 = arith.constant 0 : index
    %25 = vector.load %arg16[%c1, %c0_20] : memref<8x128xf32, #tpu.memory_space<vmem>>, vector<1x128xf32>
    tpu.vector_store %arg16[%c1, %c0_20], %24 {strides = array<i32>} : memref<8x128xf32, #tpu.memory_space<vmem>>, vector<1x128xf32>,
    %26 = vector.extract_strided_slice %5 {offsets = [2, 0], sizes = [1, 128], strides = [1, 1]} : vector<8x128xf32> to vector<1x128xf32>
    %27 = arith.truncf %24 : vector<1x128xf32> to vector<1x128xbf16>
    %cst_21 = arith.constant dense<0.000000e+00> : vector<1x128xf32>
    %28 = tpu.matmul %27, %12, %cst_21 {dimension_numbers = #tpu.dot_dimension_numbers<[1], [0], [0], [1], [0, 0, 1, 1], [], []>} : vector<1x128xbf16>, vector<128x128xbf16>, vector<1x128xf32> -> vector<1x128xf32>
    %29 = arith.addf %26, %28 : vector<1x128xf32>
    %30 = math.tanh %29 : vector<1x128xf32>
    %c2 = arith.constant 2 : index
    %c0_22 = arith.constant 0 : index
    %31 = vector.load %arg16[%c2, %c0_22] : memref<8x128xf32, #tpu.memory_space<vmem>>, vector<1x128xf32>
    tpu.vector_store %arg16[%c2, %c0_22], %30 {strides = array<i32>} : memref<8x128xf32, #tpu.memory_space<vmem>>, vector<1x128xf32>,
    %32 = vector.extract_strided_slice %5 {offsets = [3, 0], sizes = [1, 128], strides = [1, 1]} : vector<8x128xf32> to vector<1x128xf32>
    %33 = arith.truncf %30 : vector<1x128xf32> to vector<1x128xbf16>
    %cst_23 = arith.constant dense<0.000000e+00> : vector<1x128xf32>
    %34 = tpu.matmul %33, %12, %cst_23 {dimension_numbers = #tpu.dot_dimension_numbers<[1], [0], [0], [1], [0, 0, 1, 1], [], []>} : vector<1x128xbf16>, vector<128x128xbf16>, vector<1x128xf32> -> vector<1x128xf32>
    %35 = arith.addf %32, %34 : vector<1x128xf32>
    %36 = math.tanh %35 : vector<1x128xf32>
    %c3 = arith.constant 3 : index
    %c0_24 = arith.constant 0 : index
    %37 = vector.load %arg16[%c3, %c0_24] : memref<8x128xf32, #tpu.memory_space<vmem>>, vector<1x128xf32>
    tpu.vector_store %arg16[%c3, %c0_24], %36 {strides = array<i32>} : memref<8x128xf32, #tpu.memory_space<vmem>>, vector<1x128xf32>,
    %38 = vector.extract_strided_slice %5 {offsets = [4, 0], sizes = [1, 128], strides = [1, 1]} : vector<8x128xf32> to vector<1x128xf32>
    %39 = arith.truncf %36 : vector<1x128xf32> to vector<1x128xbf16>
    %cst_25 = arith.constant dense<0.000000e+00> : vector<1x128xf32>
    %40 = tpu.matmul %39, %12, %cst_25 {dimension_numbers = #tpu.dot_dimension_numbers<[1], [0], [0], [1], [0, 0, 1, 1], [], []>} : vector<1x128xbf16>, vector<128x128xbf16>, vector<1x128xf32> -> vector<1x128xf32>
    %41 = arith.addf %38, %40 : vector<1x128xf32>
    %42 = math.tanh %41 : vector<1x128xf32>
    %c4 = arith.constant 4 : index
    %c0_26 = arith.constant 0 : index
    %43 = vector.load %arg16[%c4, %c0_26] : memref<8x128xf32, #tpu.memory_space<vmem>>, vector<1x128xf32>
    tpu.vector_store %arg16[%c4, %c0_26], %42 {strides = array<i32>} : memref<8x128xf32, #tpu.memory_space<vmem>>, vector<1x128xf32>,
    %44 = vector.extract_strided_slice %5 {offsets = [5, 0], sizes = [1, 128], strides = [1, 1]} : vector<8x128xf32> to vector<1x128xf32>
    %45 = arith.truncf %42 : vector<1x128xf32> to vector<1x128xbf16>
    %cst_27 = arith.constant dense<0.000000e+00> : vector<1x128xf32>
    %46 = tpu.matmul %45, %12, %cst_27 {dimension_numbers = #tpu.dot_dimension_numbers<[1], [0], [0], [1], [0, 0, 1, 1], [], []>} : vector<1x128xbf16>, vector<128x128xbf16>, vector<1x128xf32> -> vector<1x128xf32>
    %47 = arith.addf %44, %46 : vector<1x128xf32>
    %48 = math.tanh %47 : vector<1x128xf32>
    %c5 = arith.constant 5 : index
    %c0_28 = arith.constant 0 : index
    %49 = vector.load %arg16[%c5, %c0_28] : memref<8x128xf32, #tpu.memory_space<vmem>>, vector<1x128xf32>
    tpu.vector_store %arg16[%c5, %c0_28], %48 {strides = array<i32>} : memref<8x128xf32, #tpu.memory_space<vmem>>, vector<1x128xf32>,
    %50 = vector.extract_strided_slice %5 {offsets = [6, 0], sizes = [1, 128], strides = [1, 1]} : vector<8x128xf32> to vector<1x128xf32>
    %51 = arith.truncf %48 : vector<1x128xf32> to vector<1x128xbf16>
    %cst_29 = arith.constant dense<0.000000e+00> : vector<1x128xf32>
    %52 = tpu.matmul %51, %12, %cst_29 {dimension_numbers = #tpu.dot_dimension_numbers<[1], [0], [0], [1], [0, 0, 1, 1], [], []>} : vector<1x128xbf16>, vector<128x128xbf16>, vector<1x128xf32> -> vector<1x128xf32>
    %53 = arith.addf %50, %52 : vector<1x128xf32>
    %54 = math.tanh %53 : vector<1x128xf32>
    %c6 = arith.constant 6 : index
    %c0_30 = arith.constant 0 : index
    %55 = vector.load %arg16[%c6, %c0_30] : memref<8x128xf32, #tpu.memory_space<vmem>>, vector<1x128xf32>
    tpu.vector_store %arg16[%c6, %c0_30], %54 {strides = array<i32>} : memref<8x128xf32, #tpu.memory_space<vmem>>, vector<1x128xf32>,
    %56 = vector.extract_strided_slice %5 {offsets = [7, 0], sizes = [1, 128], strides = [1, 1]} : vector<8x128xf32> to vector<1x128xf32>
    %57 = arith.truncf %54 : vector<1x128xf32> to vector<1x128xbf16>
    %cst_31 = arith.constant dense<0.000000e+00> : vector<1x128xf32>
    %58 = tpu.matmul %57, %12, %cst_31 {dimension_numbers = #tpu.dot_dimension_numbers<[1], [0], [0], [1], [0, 0, 1, 1], [], []>} : vector<1x128xbf16>, vector<128x128xbf16>, vector<1x128xf32> -> vector<1x128xf32>
    %59 = arith.addf %56, %58 : vector<1x128xf32>
    %60 = math.tanh %59 : vector<1x128xf32>
    %c7 = arith.constant 7 : index
    %c0_32 = arith.constant 0 : index
    %61 = vector.load %arg16[%c7, %c0_32] : memref<8x128xf32, #tpu.memory_space<vmem>>, vector<1x128xf32>
    tpu.vector_store %arg16[%c7, %c0_32], %60 {strides = array<i32>} : memref<8x128xf32, #tpu.memory_space<vmem>>, vector<1x128xf32>,
    %c0_33 = arith.constant 0 : index
    %c0_34 = arith.constant 0 : index
    %62 = vector.load %arg7[%c0_33, %c0_34] : memref<128x128xbf16, #tpu.memory_space<vmem>>, vector<128x128xbf16>
    %63 = vector.extract_strided_slice %11 {offsets = [0, 0], sizes = [1, 128], strides = [1, 1]} : vector<8x128xf32> to vector<1x128xf32>
    %64 = arith.truncf %60 : vector<1x128xf32> to vector<1x128xbf16>
    %cst_35 = arith.constant dense<0.000000e+00> : vector<1x128xf32>
    %65 = tpu.matmul %64, %62, %cst_35 {dimension_numbers = #tpu.dot_dimension_numbers<[1], [0], [0], [1], [0, 0, 1, 1], [], []>} : vector<1x128xbf16>, vector<128x128xbf16>, vector<1x128xf32> -> vector<1x128xf32>
    %66 = arith.addf %63, %65 : vector<1x128xf32>
    %67 = math.tanh %66 : vector<1x128xf32>
    %c0_36 = arith.constant 0 : index
    %c0_37 = arith.constant 0 : index
    %68 = vector.load %arg17[%c0_36, %c0_37] : memref<8x128xf32, #tpu.memory_space<vmem>>, vector<1x128xf32>
    tpu.vector_store %arg17[%c0_36, %c0_37], %67 {strides = array<i32>} : memref<8x128xf32, #tpu.memory_space<vmem>>, vector<1x128xf32>,
    %69 = vector.extract_strided_slice %11 {offsets = [1, 0], sizes = [1, 128], strides = [1, 1]} : vector<8x128xf32> to vector<1x128xf32>
    %70 = arith.truncf %67 : vector<1x128xf32> to vector<1x128xbf16>
    %cst_38 = arith.constant dense<0.000000e+00> : vector<1x128xf32>
    %71 = tpu.matmul %70, %62, %cst_38 {dimension_numbers = #tpu.dot_dimension_numbers<[1], [0], [0], [1], [0, 0, 1, 1], [], []>} : vector<1x128xbf16>, vector<128x128xbf16>, vector<1x128xf32> -> vector<1x128xf32>
    %72 = arith.addf %69, %71 : vector<1x128xf32>
    %73 = math.tanh %72 : vector<1x128xf32>
    %c1_39 = arith.constant 1 : index
    %c0_40 = arith.constant 0 : index
    %74 = vector.load %arg17[%c1_39, %c0_40] : memref<8x128xf32, #tpu.memory_space<vmem>>, vector<1x128xf32>
    tpu.vector_store %arg17[%c1_39, %c0_40], %73 {strides = array<i32>} : memref<8x128xf32, #tpu.memory_space<vmem>>, vector<1x128xf32>,
    %75 = vector.extract_strided_slice %11 {offsets = [2, 0], sizes = [1, 128], strides = [1, 1]} : vector<8x128xf32> to vector<1x128xf32>
    %76 = arith.truncf %73 : vector<1x128xf32> to vector<1x128xbf16>
    %cst_41 = arith.constant dense<0.000000e+00> : vector<1x128xf32>
    %77 = tpu.matmul %76, %62, %cst_41 {dimension_numbers = #tpu.dot_dimension_numbers<[1], [0], [0], [1], [0, 0, 1, 1], [], []>} : vector<1x128xbf16>, vector<128x128xbf16>, vector<1x128xf32> -> vector<1x128xf32>
    %78 = arith.addf %75, %77 : vector<1x128xf32>
    %79 = math.tanh %78 : vector<1x128xf32>
    %c2_42 = arith.constant 2 : index
    %c0_43 = arith.constant 0 : index
    %80 = vector.load %arg17[%c2_42, %c0_43] : memref<8x128xf32, #tpu.memory_space<vmem>>, vector<1x128xf32>
    tpu.vector_store %arg17[%c2_42, %c0_43], %79 {strides = array<i32>} : memref<8x128xf32, #tpu.memory_space<vmem>>, vector<1x128xf32>,
    %81 = vector.extract_strided_slice %11 {offsets = [3, 0], sizes = [1, 128], strides = [1, 1]} : vector<8x128xf32> to vector<1x128xf32>
    %82 = arith.truncf %79 : vector<1x128xf32> to vector<1x128xbf16>
    %cst_44 = arith.constant dense<0.000000e+00> : vector<1x128xf32>
    %83 = tpu.matmul %82, %62, %cst_44 {dimension_numbers = #tpu.dot_dimension_numbers<[1], [0], [0], [1], [0, 0, 1, 1], [], []>} : vector<1x128xbf16>, vector<128x128xbf16>, vector<1x128xf32> -> vector<1x128xf32>
    %84 = arith.addf %81, %83 : vector<1x128xf32>
    %85 = math.tanh %84 : vector<1x128xf32>
    %c3_45 = arith.constant 3 : index
    %c0_46 = arith.constant 0 : index
    %86 = vector.load %arg17[%c3_45, %c0_46] : memref<8x128xf32, #tpu.memory_space<vmem>>, vector<1x128xf32>
    tpu.vector_store %arg17[%c3_45, %c0_46], %85 {strides = array<i32>} : memref<8x128xf32, #tpu.memory_space<vmem>>, vector<1x128xf32>,
    %87 = vector.extract_strided_slice %11 {offsets = [4, 0], sizes = [1, 128], strides = [1, 1]} : vector<8x128xf32> to vector<1x128xf32>
    %88 = arith.truncf %85 : vector<1x128xf32> to vector<1x128xbf16>
    %cst_47 = arith.constant dense<0.000000e+00> : vector<1x128xf32>
    %89 = tpu.matmul %88, %62, %cst_47 {dimension_numbers = #tpu.dot_dimension_numbers<[1], [0], [0], [1], [0, 0, 1, 1], [], []>} : vector<1x128xbf16>, vector<128x128xbf16>, vector<1x128xf32> -> vector<1x128xf32>
    %90 = arith.addf %87, %89 : vector<1x128xf32>
    %91 = math.tanh %90 : vector<1x128xf32>
    %c4_48 = arith.constant 4 : index
    %c0_49 = arith.constant 0 : index
    %92 = vector.load %arg17[%c4_48, %c0_49] : memref<8x128xf32, #tpu.memory_space<vmem>>, vector<1x128xf32>
    tpu.vector_store %arg17[%c4_48, %c0_49], %91 {strides = array<i32>} : memref<8x128xf32, #tpu.memory_space<vmem>>, vector<1x128xf32>,
    %93 = vector.extract_strided_slice %11 {offsets = [5, 0], sizes = [1, 128], strides = [1, 1]} : vector<8x128xf32> to vector<1x128xf32>
    %94 = arith.truncf %91 : vector<1x128xf32> to vector<1x128xbf16>
    %cst_50 = arith.constant dense<0.000000e+00> : vector<1x128xf32>
    %95 = tpu.matmul %94, %62, %cst_50 {dimension_numbers = #tpu.dot_dimension_numbers<[1], [0], [0], [1], [0, 0, 1, 1], [], []>} : vector<1x128xbf16>, vector<128x128xbf16>, vector<1x128xf32> -> vector<1x128xf32>
    %96 = arith.addf %93, %95 : vector<1x128xf32>
    %97 = math.tanh %96 : vector<1x128xf32>
    %c5_51 = arith.constant 5 : index
    %c0_52 = arith.constant 0 : index
    %98 = vector.load %arg17[%c5_51, %c0_52] : memref<8x128xf32, #tpu.memory_space<vmem>>, vector<1x128xf32>
    tpu.vector_store %arg17[%c5_51, %c0_52], %97 {strides = array<i32>} : memref<8x128xf32, #tpu.memory_space<vmem>>, vector<1x128xf32>,
    %99 = vector.extract_strided_slice %11 {offsets = [6, 0], sizes = [1, 128], strides = [1, 1]} : vector<8x128xf32> to vector<1x128xf32>
    %100 = arith.truncf %97 : vector<1x128xf32> to vector<1x128xbf16>
    %cst_53 = arith.constant dense<0.000000e+00> : vector<1x128xf32>
    %101 = tpu.matmul %100, %62, %cst_53 {dimension_numbers = #tpu.dot_dimension_numbers<[1], [0], [0], [1], [0, 0, 1, 1], [], []>} : vector<1x128xbf16>, vector<128x128xbf16>, vector<1x128xf32> -> vector<1x128xf32>
    %102 = arith.addf %99, %101 : vector<1x128xf32>
    %103 = math.tanh %102 : vector<1x128xf32>
    %c6_54 = arith.constant 6 : index
    %c0_55 = arith.constant 0 : index
    %104 = vector.load %arg17[%c6_54, %c0_55] : memref<8x128xf32, #tpu.memory_space<vmem>>, vector<1x128xf32>
    tpu.vector_store %arg17[%c6_54, %c0_55], %103 {strides = array<i32>} : memref<8x128xf32, #tpu.memory_space<vmem>>, vector<1x128xf32>,
    %105 = vector.extract_strided_slice %11 {offsets = [7, 0], sizes = [1, 128], strides = [1, 1]} : vector<8x128xf32> to vector<1x128xf32>
    %106 = arith.truncf %103 : vector<1x128xf32> to vector<1x128xbf16>
    %cst_56 = arith.constant dense<0.000000e+00> : vector<1x128xf32>
    %107 = tpu.matmul %106, %62, %cst_56 {dimension_numbers = #tpu.dot_dimension_numbers<[1], [0], [0], [1], [0, 0, 1, 1], [], []>} : vector<1x128xbf16>, vector<128x128xbf16>, vector<1x128xf32> -> vector<1x128xf32>
    %108 = arith.addf %105, %107 : vector<1x128xf32>
    %109 = math.tanh %108 : vector<1x128xf32>
    %c7_57 = arith.constant 7 : index
    %c0_58 = arith.constant 0 : index
    %110 = vector.load %arg17[%c7_57, %c0_58] : memref<8x128xf32, #tpu.memory_space<vmem>>, vector<1x128xf32>
    tpu.vector_store %arg17[%c7_57, %c0_58], %109 {strides = array<i32>} : memref<8x128xf32, #tpu.memory_space<vmem>>, vector<1x128xf32>,
    %c0_59 = arith.constant 0 : index
    %c0_60 = arith.constant 0 : index
    %111 = vector.load %arg16[%c0_59, %c0_60] : memref<8x128xf32, #tpu.memory_space<vmem>>, vector<8x128xf32>
    %c0_61 = arith.constant 0 : index
    %c0_62 = arith.constant 0 : index
    %112 = vector.load %arg17[%c0_61, %c0_62] : memref<8x128xf32, #tpu.memory_space<vmem>>, vector<8x128xf32>
    %113 = arith.truncf %111 : vector<8x128xf32> to vector<8x128xbf16>
    %114 = arith.truncf %112 : vector<8x128xf32> to vector<8x128xbf16>
    %c0_63 = arith.constant 0 : index
    %c0_64 = arith.constant 0 : index
    %115 = vector.load %arg9[%c0_63, %c0_64] : memref<128x128xbf16, #tpu.memory_space<vmem>>, vector<128x128xbf16>
    %cst_65 = arith.constant dense<0.000000e+00> : vector<8x128xf32>
    %116 = tpu.matmul %113, %115, %cst_65 {dimension_numbers = #tpu.dot_dimension_numbers<[1], [0], [0], [1], [0, 0, 1, 1], [], []>} : vector<8x128xbf16>, vector<128x128xbf16>, vector<8x128xf32> -> vector<8x128xf32>
    %c0_66 = arith.constant 0 : index
    %c0_67 = arith.constant 0 : index
    %117 = vector.load %arg10[%c0_66, %c0_67] : memref<1x128xf32, #tpu.memory_space<vmem>>, vector<1x128xf32>
    %118 = vector.broadcast %117 : vector<1x128xf32> to vector<8x128xf32>
    %119 = arith.addf %116, %118 : vector<8x128xf32>
    %120 = arith.truncf %119 : vector<8x128xf32> to vector<8x128xbf16>
    %cst_68 = arith.constant dense<0.000000e+00> : vector<8x8xf32>
    %121 = tpu.matmul %114, %120, %cst_68 {dimension_numbers = #tpu.dot_dimension_numbers<[1], [1], [0], [0], [0, 0, 1, 0], [], []>} : vector<8x128xbf16>, vector<8x128xbf16>, vector<8x8xf32> -> vector<8x8xf32>
    %cst_69 = arith.constant dense<0xFF800000> : vector<8xf32>
    %122 = vector.multi_reduction <maximumf>, %121, %cst_69 [1] : vector<8x8xf32> to vector<8xf32>
    %123 = vector.shape_cast %122 : vector<8xf32> to vector<8x1xf32>
    %124 = vector.broadcast %123 : vector<8x1xf32> to vector<8x8xf32>
    %125 = arith.subf %121, %124 : vector<8x8xf32>
    %126 = math.exp %125 : vector<8x8xf32>
    %cst_70 = arith.constant dense<0.000000e+00> : vector<8xf32>
    %127 = vector.multi_reduction <add>, %126, %cst_70 [1] : vector<8x8xf32> to vector<8xf32>
    %128 = vector.shape_cast %127 : vector<8xf32> to vector<8x1xf32>
    %129 = tpu.reciprocal %128 {approx = true} : vector<8x1xf32> -> vector<8x1xf32>
    %130 = vector.broadcast %129 : vector<8x1xf32> to vector<8x8xf32>
    %131 = arith.mulf %126, %130 : vector<8x8xf32>
    %cst_71 = arith.constant 0.000000e+00 : f32
    %132 = vector.broadcast %cst_71 : f32 to vector<8x120xf32>
    %133 = tpu.concatenate %131, %132 in 1 : vector<8x8xf32>, vector<8x120xf32> -> vector<8x128xf32>
    %c0_72 = arith.constant 0 : index
    %c0_73 = arith.constant 0 : index
    %134 = vector.load %arg15[%c0_72, %c0_73] : memref<8x128xf32, #tpu.memory_space<vmem>>, vector<8x128xf32>
    tpu.vector_store %arg15[%c0_72, %c0_73], %133 {strides = array<i32>} : memref<8x128xf32, #tpu.memory_space<vmem>>, vector<8x128xf32>,
    %135 = arith.truncf %131 : vector<8x8xf32> to vector<8x8xbf16>
    %cst_74 = arith.constant dense<0.000000e+00> : vector<8x128xf32>
    %136 = tpu.matmul %135, %113, %cst_74 {dimension_numbers = #tpu.dot_dimension_numbers<[1], [0], [0], [1], [0, 0, 1, 1], [], []>} : vector<8x8xbf16>, vector<8x128xbf16>, vector<8x128xf32> -> vector<8x128xf32>
    %c0_75 = arith.constant 0 : index
    %c0_76 = arith.constant 0 : index
    %137 = vector.load %arg11[%c0_75, %c0_76] : memref<128x128xbf16, #tpu.memory_space<vmem>>, vector<128x128xbf16>
    %cst_77 = arith.constant dense<0.000000e+00> : vector<8x128xf32>
    %138 = tpu.matmul %114, %137, %cst_77 {dimension_numbers = #tpu.dot_dimension_numbers<[1], [0], [0], [1], [0, 0, 1, 1], [], []>} : vector<8x128xbf16>, vector<128x128xbf16>, vector<8x128xf32> -> vector<8x128xf32>
    %139 = arith.truncf %136 : vector<8x128xf32> to vector<8x128xbf16>
    %c0_78 = arith.constant 0 : index
    %c0_79 = arith.constant 0 : index
    %140 = vector.load %arg12[%c0_78, %c0_79] : memref<128x128xbf16, #tpu.memory_space<vmem>>, vector<128x128xbf16>
    %cst_80 = arith.constant dense<0.000000e+00> : vector<8x128xf32>
    %141 = tpu.matmul %139, %140, %cst_80 {dimension_numbers = #tpu.dot_dimension_numbers<[1], [0], [0], [1], [0, 0, 1, 1], [], []>} : vector<8x128xbf16>, vector<128x128xbf16>, vector<8x128xf32> -> vector<8x128xf32>
    %142 = arith.addf %138, %141 : vector<8x128xf32>
    %c0_81 = arith.constant 0 : index
    %c0_82 = arith.constant 0 : index
    %143 = vector.load %arg13[%c0_81, %c0_82] : memref<1x128xf32, #tpu.memory_space<vmem>>, vector<1x128xf32>
    %144 = vector.broadcast %143 : vector<1x128xf32> to vector<8x128xf32>
    %145 = arith.addf %142, %144 : vector<8x128xf32>
    %c0_83 = arith.constant 0 : index
    %c0_84 = arith.constant 0 : index
    %146 = vector.load %arg14[%c0_83, %c0_84] : memref<8x128xf32, #tpu.memory_space<vmem>>, vector<8x128xf32>
    tpu.vector_store %arg14[%c0_83, %c0_84], %145 {strides = array<i32>} : memref<8x128xf32, #tpu.memory_space<vmem>>, vector<8x128xf32>,
    return
  }
}

</mosaic_0001>

<llo_original>
// kernel: tpu_custom_call.1
$region0: #{tpu_custom_call.1}
  #allocation0 [shape = 'u32[]', space=smem, size = 0x4, offset = 0x4, fixed_abs, tag = 'smem constant byte address 0x4 - core index']
  #allocation1 [shape = 'u32[144,128]{1,0:T(1,128)}', space=vmem, size = 0x12000, scoped, tag = 'internal scratch']
  #allocation2 [shape = 'f32[8,128]{1,0:T(8,128)}', space=vmem, size = 0x1000, scoped, tag = 'scratch operand']
  #allocation3 [shape = 'f32[8,128]{1,0:T(8,128)}', space=vmem, size = 0x1000, scoped, tag = 'scratch operand']
  %s0 = inlined_call_operand.hbm [shape: bf16[8,128], index: 0, kind: input, shape index: {}]
  %s1 = inlined_call_operand.hbm [shape: bf16[8,128], index: 1, kind: input, shape index: {}]
  %s2 = inlined_call_operand.vmem [shape: f32[1,128], index: 2, kind: input, shape index: {}]
  %s3 = inlined_call_operand.hbm [shape: bf16[128,128], index: 3, kind: input, shape index: {}]
  %s4 = inlined_call_operand.hbm [shape: bf16[128,128], index: 4, kind: input, shape index: {}]
  %s5 = inlined_call_operand.vmem [shape: f32[1,128], index: 5, kind: input, shape index: {}]
  %s6 = inlined_call_operand.hbm [shape: bf16[128,128], index: 6, kind: input, shape index: {}]
  %s7 = inlined_call_operand.hbm [shape: bf16[128,128], index: 7, kind: input, shape index: {}]
  %s8 = inlined_call_operand.vmem [shape: f32[1,128], index: 8, kind: input, shape index: {}]
  %s9 = inlined_call_operand.hbm [shape: bf16[128,128], index: 9, kind: input, shape index: {}]
  %s10 = inlined_call_operand.vmem [shape: f32[1,128], index: 10, kind: input, shape index: {}]
  %s11 = inlined_call_operand.hbm [shape: bf16[128,128], index: 11, kind: input, shape index: {}]
  %s12 = inlined_call_operand.hbm [shape: bf16[128,128], index: 12, kind: input, shape index: {}]
  %s13 = inlined_call_operand.vmem [shape: f32[1,128], index: 13, kind: input, shape index: {}]
  %s14 = inlined_call_operand.hbm [shape: f32[8,128], index: 14, kind: output, shape index: {0}]
  %s15 = inlined_call_operand.hbm [shape: f32[8,128], index: 15, kind: output, shape index: {1}]
  %16 = xla_tuple %s14, %s15
  %s17 = sld [smem:[#allocation0]]
  $region110: #{tpu_custom_call.1} parent=0
    _
  %s19 = ssub.s32 1, %s17
  %s20 = scalar_select 0, %s19, %s17
  $region1: #{tpu_custom_call.1} parent=0
    #allocation4 [shape = 'u8[2048]{0}', space=vmem, size = 0x800, scoped, tag = 'input window, operand 0, single buffered']
    #allocation5 [shape = 's32[1]{0}', space=sflag, size = 0x4, scoped, tag = 'scoped memory for tpu_custom_call.1']
    #allocation6 [shape = 's32[1]{0}', space=sflag, size = 0x4, scoped, tag = 'scoped memory for tpu_custom_call.1']
    #allocation7 [shape = 'u8[2048]{0}', space=vmem, size = 0x800, scoped, tag = 'input window, operand 1, single buffered']
    #allocation8 [shape = 's32[1]{0}', space=sflag, size = 0x4, scoped, tag = 'scoped memory for tpu_custom_call.1']
    #allocation9 [shape = 'u8[32768]{0}', space=vmem, size = 0x8000, scoped, tag = 'input window, operand 3, single buffered']
    #allocation10 [shape = 'u8[32768]{0}', space=vmem, size = 0x8000, scoped, tag = 'input window, operand 4, single buffered']
    #allocation11 [shape = 's32[1]{0}', space=sflag, size = 0x4, scoped, tag = 'scoped memory for tpu_custom_call.1']
    #allocation12 [shape = 'u8[32768]{0}', space=vmem, size = 0x8000, scoped, tag = 'input window, operand 6, single buffered']
    #allocation13 [shape = 'u8[32768]{0}', space=vmem, size = 0x8000, scoped, tag = 'input window, operand 7, single buffered']
    #allocation14 [shape = 's32[1]{0}', space=sflag, size = 0x4, scoped, tag = 'scoped memory for tpu_custom_call.1']
    #allocation15 [shape = 'u8[32768]{0}', space=vmem, size = 0x8000, scoped, tag = 'input window, operand 9, single buffered']
    #allocation16 [shape = 'u8[32768]{0}', space=vmem, size = 0x8000, scoped, tag = 'input window, operand 11, single buffered']
    #allocation17 [shape = 's32[1]{0}', space=sflag, size = 0x4, scoped, tag = 'scoped memory for tpu_custom_call.1']
    #allocation18 [shape = 'u8[32768]{0}', space=vmem, size = 0x8000, scoped, tag = 'input window, operand 12, single buffered']
    #allocation19 [shape = 'u8[4096]{0}', space=vmem, size = 0x1000, scoped, tag = 'output window, operand 0, single buffered']
    #allocation20 [shape = 'u8[4096]{0}', space=vmem, size = 0x1000, scoped, tag = 'output window, operand 1, single buffered']
    #allocation21 [shape = 's32[1]{0}', space=sflag, size = 0x4, scoped, tag = 'scoped memory for tpu_custom_call.1']
    %21 = vsyncpa [#allocation5], 0
    %22 = vsyncpa [#allocation8], 0
    %23 = vsyncpa [#allocation11], 0
    %24 = vsyncpa [#allocation14], 0
    %25 = vsyncpa [#allocation17], 0
    %26 = vsyncpa [#allocation6], 0
    %27 = vsyncpa [#allocation21], 0
    // Predicated region
    $region2: #{tpu_custom_call.1} parent=1 // pred_check
      _
    $region3: #{tpu_custom_call.1} parent=1 // pred_check_branch
      %29 = sbr.rel (0) target = $region5
    $region4: #{tpu_custom_call.1} parent=1 // pred_region
      %s31 = ssub.s32 64, 64
      %32 = vsyncadd [#allocation5], %s31
      %s34 = sshll.u32 [#allocation4], 4
      %s35 = int_to_ptr.vmem [resolvable:$true] %s34
      %37 = dma.hbm_to_vmem [thread:$0]  %s0, 64, %s35, [#allocation5]
    $region5: #{tpu_custom_call.1} parent=1 // pred_fallthru
      _
    // Predicated region
    $region6: #{tpu_custom_call.1} parent=1 // pred_check
      _
    $region7: #{tpu_custom_call.1} parent=1 // pred_check_branch
      %39 = sbr.rel (0) target = $region9
    $region8: #{tpu_custom_call.1} parent=1 // pred_region
      %s41 = ssub.s32 64, 64
      %42 = vsyncadd [#allocation8], %s41
      %s44 = sshll.u32 [#allocation7], 4
      %s45 = int_to_ptr.vmem [resolvable:$true] %s44
      %47 = dma.hbm_to_vmem [thread:$0]  %s1, 64, %s45, [#allocation8]
    $region9: #{tpu_custom_call.1} parent=1 // pred_fallthru
      _
    // Predicated region
    $region10: #{tpu_custom_call.1} parent=1 // pred_check
      _
    $region11: #{tpu_custom_call.1} parent=1 // pred_check_branch
      %49 = sbr.rel (0) target = $region13
    $region12: #{tpu_custom_call.1} parent=1 // pred_region
      _
    $region13: #{tpu_custom_call.1} parent=1 // pred_fallthru
      _
    // Predicated region
    $region14: #{tpu_custom_call.1} parent=1 // pred_check
      _
    $region15: #{tpu_custom_call.1} parent=1 // pred_check_branch
      %51 = sbr.rel (0) target = $region17
    $region16: #{tpu_custom_call.1} parent=1 // pred_region
      %s53 = ssub.s32 1024, 1024
      %54 = vsyncadd [#allocation8], %s53
      %s55 = sshll.u32 [#allocation9], 4
      %s56 = int_to_ptr.vmem [resolvable:$true] %s55
      %61 = dma.hbm_to_vmem [thread:$0]  %s3, 1024, %s56, [#allocation8], 64, 64, 4
    $region17: #{tpu_custom_call.1} parent=1 // pred_fallthru
      _
    // Predicated region
    $region18: #{tpu_custom_call.1} parent=1 // pred_check
      _
    $region19: #{tpu_custom_call.1} parent=1 // pred_check_branch
      %63 = sbr.rel (0) target = $region21
    $region20: #{tpu_custom_call.1} parent=1 // pred_region
      %s65 = ssub.s32 1024, 1024
      %66 = vsyncadd [#allocation11], %s65
      %s67 = sshll.u32 [#allocation10], 4
      %s68 = int_to_ptr.vmem [resolvable:$true] %s67
      %73 = dma.hbm_to_vmem [thread:$0]  %s4, 1024, %s68, [#allocation11], 64, 64, 4
    $region21: #{tpu_custom_call.1} parent=1 // pred_fallthru
      _
    // Predicated region
    $region22: #{tpu_custom_call.1} parent=1 // pred_check
      _
    $region23: #{tpu_custom_call.1} parent=1 // pred_check_branch
      %75 = sbr.rel (0) target = $region25
    $region24: #{tpu_custom_call.1} parent=1 // pred_region
      _
    $region25: #{tpu_custom_call.1} parent=1 // pred_fallthru
      _
    // Predicated region
    $region26: #{tpu_custom_call.1} parent=1 // pred_check
      _
    $region27: #{tpu_custom_call.1} parent=1 // pred_check_branch
      %77 = sbr.rel (0) target = $region29
    $region28: #{tpu_custom_call.1} parent=1 // pred_region
      %s79 = ssub.s32 1024, 1024
      %80 = vsyncadd [#allocation11], %s79
      %s81 = sshll.u32 [#allocation12], 4
      %s82 = int_to_ptr.vmem [resolvable:$true] %s81
      %87 = dma.hbm_to_vmem [thread:$0]  %s6, 1024, %s82, [#allocation11], 64, 64, 4
    $region29: #{tpu_custom_call.1} parent=1 // pred_fallthru
      _
    // Predicated region
    $region30: #{tpu_custom_call.1} parent=1 // pred_check
      _
    $region31: #{tpu_custom_call.1} parent=1 // pred_check_branch
      %89 = sbr.rel (0) target = $region33
    $region32: #{tpu_custom_call.1} parent=1 // pred_region
      %s91 = ssub.s32 1024, 1024
      %92 = vsyncadd [#allocation14], %s91
      %s93 = sshll.u32 [#allocation13], 4
      %s94 = int_to_ptr.vmem [resolvable:$true] %s93
      %99 = dma.hbm_to_vmem [thread:$0]  %s7, 1024, %s94, [#allocation14], 64, 64, 4
    $region33: #{tpu_custom_call.1} parent=1 // pred_fallthru
      _
    // Predicated region
    $region34: #{tpu_custom_call.1} parent=1 // pred_check
      _
    $region35: #{tpu_custom_call.1} parent=1 // pred_check_branch
      %101 = sbr.rel (0) target = $region37
    $region36: #{tpu_custom_call.1} parent=1 // pred_region
      _
    $region37: #{tpu_custom_call.1} parent=1 // pred_fallthru
      _
    // Predicated region
    $region38: #{tpu_custom_call.1} parent=1 // pred_check
      _
    $region39: #{tpu_custom_call.1} parent=1 // pred_check_branch
      %103 = sbr.rel (0) target = $region41
    $region40: #{tpu_custom_call.1} parent=1 // pred_region
      %s105 = ssub.s32 1024, 1024
      %106 = vsyncadd [#allocation14], %s105
      %s107 = sshll.u32 [#allocation15], 4
      %s108 = int_to_ptr.vmem [resolvable:$true] %s107
      %113 = dma.hbm_to_vmem [thread:$0]  %s9, 1024, %s108, [#allocation14], 64, 64, 4
    $region41: #{tpu_custom_call.1} parent=1 // pred_fallthru
      _
    // Predicated region
    $region42: #{tpu_custom_call.1} parent=1 // pred_check
      _
    $region43: #{tpu_custom_call.1} parent=1 // pred_check_branch
      %115 = sbr.rel (0) target = $region45
    $region44: #{tpu_custom_call.1} parent=1 // pred_region
      _
    $region45: #{tpu_custom_call.1} parent=1 // pred_fallthru
      _
    // Predicated region
    $region46: #{tpu_custom_call.1} parent=1 // pred_check
      _
    $region47: #{tpu_custom_call.1} parent=1 // pred_check_branch
      %117 = sbr.rel (0) target = $region49
    $region48: #{tpu_custom_call.1} parent=1 // pred_region
      %s119 = ssub.s32 1024, 1024
      %120 = vsyncadd [#allocation17], %s119
      %s121 = sshll.u32 [#allocation16], 4
      %s122 = int_to_ptr.vmem [resolvable:$true] %s121
      %127 = dma.hbm_to_vmem [thread:$0]  %s11, 1024, %s122, [#allocation17], 64, 64, 4
    $region49: #{tpu_custom_call.1} parent=1 // pred_fallthru
      _
    // Predicated region
    $region50: #{tpu_custom_call.1} parent=1 // pred_check
      _
    $region51: #{tpu_custom_call.1} parent=1 // pred_check_branch
      %129 = sbr.rel (0) target = $region53
    $region52: #{tpu_custom_call.1} parent=1 // pred_region
      %s131 = ssub.s32 1024, 1024
      %132 = vsyncadd [#allocation17], %s131
      %s133 = sshll.u32 [#allocation18], 4
      %s134 = int_to_ptr.vmem [resolvable:$true] %s133
      %139 = dma.hbm_to_vmem [thread:$0]  %s12, 1024, %s134, [#allocation17], 64, 64, 4
    $region53: #{tpu_custom_call.1} parent=1 // pred_fallthru
      _
    // Predicated region
    $region54: #{tpu_custom_call.1} parent=1 // pred_check
      _
    $region55: #{tpu_custom_call.1} parent=1 // pred_check_branch
      %141 = sbr.rel (0) target = $region57
    $region56: #{tpu_custom_call.1} parent=1 // pred_region
      _
    $region57: #{tpu_custom_call.1} parent=1 // pred_fallthru
      _
    // Predicated region
    $region58: #{tpu_custom_call.1} parent=1 // pred_check
      _
    $region59: #{tpu_custom_call.1} parent=1 // pred_check_branch
      %143 = sbr.rel (0) target = $region61
    $region60: #{tpu_custom_call.1} parent=1 // pred_region
      %144 = dma.done [#allocation5], 64
    $region61: #{tpu_custom_call.1} parent=1 // pred_fallthru
      _
    // Predicated region
    $region62: #{tpu_custom_call.1} parent=1 // pred_check
      _
    $region63: #{tpu_custom_call.1} parent=1 // pred_check_branch
      %146 = sbr.rel (0) target = $region65
    $region64: #{tpu_custom_call.1} parent=1 // pred_region
      %147 = dma.done [#allocation8], 64
    $region65: #{tpu_custom_call.1} parent=1 // pred_fallthru
      _
    // Predicated region
    $region66: #{tpu_custom_call.1} parent=1 // pred_check
      _
    $region67: #{tpu_custom_call.1} parent=1 // pred_check_branch
      %149 = sbr.rel (0) target = $region69
    $region68: #{tpu_custom_call.1} parent=1 // pred_region
      %150 = dma.done [#allocation8], 1024
    $region69: #{tpu_custom_call.1} parent=1 // pred_fallthru
      _
    // Predicated region
    $region70: #{tpu_custom_call.1} parent=1 // pred_check
      _
    $region71: #{tpu_custom_call.1} parent=1 // pred_check_branch
      %152 = sbr.rel (0) target = $region73
    $region72: #{tpu_custom_call.1} parent=1 // pred_region
      %153 = dma.done [#allocation11], 1024
    $region73: #{tpu_custom_call.1} parent=1 // pred_fallthru
      _
    // Predicated region
    $region74: #{tpu_custom_call.1} parent=1 // pred_check
      _
    $region75: #{tpu_custom_call.1} parent=1 // pred_check_branch
      %155 = sbr.rel (0) target = $region77
    $region76: #{tpu_custom_call.1} parent=1 // pred_region
      %156 = dma.done [#allocation11], 1024
    $region77: #{tpu_custom_call.1} parent=1 // pred_fallthru
      _
    // Predicated region
    $region78: #{tpu_custom_call.1} parent=1 // pred_check
      _
    $region79: #{tpu_custom_call.1} parent=1 // pred_check_branch
      %158 = sbr.rel (0) target = $region81
    $region80: #{tpu_custom_call.1} parent=1 // pred_region
      %159 = dma.done [#allocation14], 1024
    $region81: #{tpu_custom_call.1} parent=1 // pred_fallthru
      _
    // Predicated region
    $region82: #{tpu_custom_call.1} parent=1 // pred_check
      _
    $region83: #{tpu_custom_call.1} parent=1 // pred_check_branch
      %161 = sbr.rel (0) target = $region85
    $region84: #{tpu_custom_call.1} parent=1 // pred_region
      %162 = dma.done [#allocation14], 1024
    $region85: #{tpu_custom_call.1} parent=1 // pred_fallthru
      _
    // Predicated region
    $region86: #{tpu_custom_call.1} parent=1 // pred_check
      _
    $region87: #{tpu_custom_call.1} parent=1 // pred_check_branch
      %164 = sbr.rel (0) target = $region89
    $region88: #{tpu_custom_call.1} parent=1 // pred_region
      %165 = dma.done [#allocation17], 1024
    $region89: #{tpu_custom_call.1} parent=1 // pred_fallthru
      _
    // Predicated region
    $region90: #{tpu_custom_call.1} parent=1 // pred_check
      _
    $region91: #{tpu_custom_call.1} parent=1 // pred_check_branch
      %167 = sbr.rel (0) target = $region93
    $region92: #{tpu_custom_call.1} parent=1 // pred_region
      %168 = dma.done [#allocation17], 1024
    $region93: #{tpu_custom_call.1} parent=1 // pred_fallthru
      _
    %v170 = vld [vmem:[#allocation4] sm:$0xf]
    %v171 = vld [vmem:[#allocation9] sm:$0xf]
    %v172 = vld [vmem:[#allocation9 + $0x4] sm:$0xf]
    %v173 = vld [vmem:[#allocation9 + $0x8] sm:$0xf]
    %v174 = vld [vmem:[#allocation9 + $0xc] sm:$0xf]
    %v175 = vld [vmem:[#allocation9 + $0x10] sm:$0xf]
    %v176 = vld [vmem:[#allocation9 + $0x14] sm:$0xf]
    %v177 = vld [vmem:[#allocation9 + $0x18] sm:$0xf]
    %v178 = vld [vmem:[#allocation9 + $0x1c] sm:$0xf]
    %v179 = vld [vmem:[#allocation9 + $0x20] sm:$0xf]
    %v180 = vld [vmem:[#allocation9 + $0x24] sm:$0xf]
    %v181 = vld [vmem:[#allocation9 + $0x28] sm:$0xf]
    %v182 = vld [vmem:[#allocation9 + $0x2c] sm:$0xf]
    %v183 = vld [vmem:[#allocation9 + $0x30] sm:$0xf]
    %v184 = vld [vmem:[#allocation9 + $0x34] sm:$0xf]
    %v185 = vld [vmem:[#allocation9 + $0x38] sm:$0xf]
    %v186 = vld [vmem:[#allocation9 + $0x3c] sm:$0xf]
    %v187 = vld [vmem:[%s5] sm:$0x1]
    %v189 = vlaneseq
    %v190 = vshrl.u32 %v189, 7
    %v191 = vsub.s32 0, %v190
    %v192 = vrot.slane %v187, %v191
    %v210 = vunpack.c.l.b16 %v171
    %v211 = vunpack.c.l.b16 %v172
    %v212 = vunpack.c.l.b16 %v173
    %v213 = vunpack.c.l.b16 %v174
    %v214 = vunpack.c.l.b16 %v175
    %v215 = vunpack.c.l.b16 %v176
    %v216 = vunpack.c.l.b16 %v177
    %v217 = vunpack.c.l.b16 %v178
    %v218 = vunpack.c.l.b16 %v179
    %v219 = vunpack.c.l.b16 %v180
    %v220 = vunpack.c.l.b16 %v181
    %v221 = vunpack.c.l.b16 %v182
    %v222 = vunpack.c.l.b16 %v183
    %v223 = vunpack.c.l.b16 %v184
    %v224 = vunpack.c.l.b16 %v185
    %v225 = vunpack.c.l.b16 %v186
    %v226 = vpack.c.b16 %v211, %v210
    %v227 = vpack.c.b16 %v213, %v212
    %v228 = vpack.c.b16 %v215, %v214
    %v229 = vpack.c.b16 %v217, %v216
    %v230 = vpack.c.b16 %v219, %v218
    %v231 = vpack.c.b16 %v221, %v220
    %v232 = vpack.c.b16 %v223, %v222
    %v233 = vpack.c.b16 %v225, %v224
    %242 = vmatprep.subr.bf16.mxu0 0
    %243 = vmatpush1.bf16.msra.mxu0 %v233
    %244 = vmatprep.subr.bf16.mxu0 0
    %245 = vmatpush1.bf16.msra.mxu0 %v232
    %246 = vmatprep.subr.bf16.mxu0 0
    %247 = vmatpush1.bf16.msra.mxu0 %v231
    %248 = vmatprep.subr.bf16.mxu0 0
    %249 = vmatpush1.bf16.msra.mxu0 %v230
    %250 = vmatprep.subr.bf16.mxu0 0
    %251 = vmatpush1.bf16.msra.mxu0 %v229
    %252 = vmatprep.subr.bf16.mxu0 0
    %253 = vmatpush1.bf16.msra.mxu0 %v228
    %254 = vmatprep.subr.bf16.mxu0 0
    %255 = vmatpush1.bf16.msra.mxu0 %v227
    %256 = vmatprep.subr.bf16.mxu0 0
    %257 = vmatpush1.bf16.msra.mxu0 %v226
    %258 = vmatprep.subr.bf16.mxu0 0
    %259 = vmatpush2.bf16.msra.mxu0 0
    %260 = vmatprep.subr.bf16.mxu0 0
    %261 = vmatpush2.bf16.msra.mxu0 0
    %262 = vmatprep.subr.bf16.mxu0 0
    %263 = vmatpush2.bf16.msra.mxu0 0
    %264 = vmatprep.subr.bf16.mxu0 0
    %265 = vmatpush2.bf16.msra.mxu0 0
    %266 = vmatprep.subr.bf16.mxu0 0
    %267 = vmatpush2.bf16.msra.mxu0 0
    %268 = vmatprep.subr.bf16.mxu0 0
    %269 = vmatpush2.bf16.msra.mxu0 0
    %270 = vmatprep.subr.bf16.mxu0 0
    %271 = vmatpush2.bf16.msra.mxu0 0
    %272 = vmatprep.subr.bf16.mxu0 0
    %273 = vmatpush2.bf16.msra.mxu0 0
    %274 = vmatprep.mubr.bf16.mxu0 0
    %275 = vmatmul.mubr.bf16.gmra.mxu0 %v170
    %v276 = vpop.f32.mrf.mxu0
    %v277 = vadd.f32 %v192, %v276
    %v278 = vpop.f32.mrf.mxu0
    %v279 = vpop.f32.mrf.mxu0
    %v280 = vpop.f32.mrf.mxu0
    %281 = vdwg.mxu0
    %v282 = vld [vmem:[#allocation7] sm:$0xf]
    %v283 = vld [vmem:[#allocation12] sm:$0xf]
    %v284 = vld [vmem:[#allocation12 + $0x4] sm:$0xf]
    %v285 = vld [vmem:[#allocation12 + $0x8] sm:$0xf]
    %v286 = vld [vmem:[#allocation12 + $0xc] sm:$0xf]
    %v287 = vld [vmem:[#allocation12 + $0x10] sm:$0xf]
    %v288 = vld [vmem:[#allocation12 + $0x14] sm:$0xf]
    %v289 = vld [vmem:[#allocation12 + $0x18] sm:$0xf]
    %v290 = vld [vmem:[#allocation12 + $0x1c] sm:$0xf]
    %v291 = vld [vmem:[#allocation12 + $0x20] sm:$0xf]
    %v292 = vld [vmem:[#allocation12 + $0x24] sm:$0xf]
    %v293 = vld [vmem:[#allocation12 + $0x28] sm:$0xf]
    %v294 = vld [vmem:[#allocation12 + $0x2c] sm:$0xf]
    %v295 = vld [vmem:[#allocation12 + $0x30] sm:$0xf]
    %v296 = vld [vmem:[#allocation12 + $0x34] sm:$0xf]
    %v297 = vld [vmem:[#allocation12 + $0x38] sm:$0xf]
    %v298 = vld [vmem:[#allocation12 + $0x3c] sm:$0xf]
    %v299 = vld [vmem:[%s8] sm:$0x1]
    %v301 = vlaneseq
    %v302 = vshrl.u32 %v301, 7
    %v303 = vsub.s32 0, %v302
    %v304 = vrot.slane %v299, %v303
    %v322 = vunpack.c.l.b16 %v283
    %v323 = vunpack.c.l.b16 %v284
    %v324 = vunpack.c.l.b16 %v285
    %v325 = vunpack.c.l.b16 %v286
    %v326 = vunpack.c.l.b16 %v287
    %v327 = vunpack.c.l.b16 %v288
    %v328 = vunpack.c.l.b16 %v289
    %v329 = vunpack.c.l.b16 %v290
    %v330 = vunpack.c.l.b16 %v291
    %v331 = vunpack.c.l.b16 %v292
    %v332 = vunpack.c.l.b16 %v293
    %v333 = vunpack.c.l.b16 %v294
    %v334 = vunpack.c.l.b16 %v295
    %v335 = vunpack.c.l.b16 %v296
    %v336 = vunpack.c.l.b16 %v297
    %v337 = vunpack.c.l.b16 %v298
    %v338 = vpack.c.b16 %v323, %v322
    %v339 = vpack.c.b16 %v325, %v324
    %v340 = vpack.c.b16 %v327, %v326
    %v341 = vpack.c.b16 %v329, %v328
    %v342 = vpack.c.b16 %v331, %v330
    %v343 = vpack.c.b16 %v333, %v332
    %v344 = vpack.c.b16 %v335, %v334
    %v345 = vpack.c.b16 %v337, %v336
    %354 = vmatprep.subr.bf16.mxu0 0
    %355 = vmatpush1.bf16.msra.mxu0 %v345
    %356 = vmatprep.subr.bf16.mxu0 0
    %357 = vmatpush1.bf16.msra.mxu0 %v344
    %358 = vmatprep.subr.bf16.mxu0 0
    %359 = vmatpush1.bf16.msra.mxu0 %v343
    %360 = vmatprep.subr.bf16.mxu0 0
    %361 = vmatpush1.bf16.msra.mxu0 %v342
    %362 = vmatprep.subr.bf16.mxu0 0
    %363 = vmatpush1.bf16.msra.mxu0 %v341
    %364 = vmatprep.subr.bf16.mxu0 0
    %365 = vmatpush1.bf16.msra.mxu0 %v340
    %366 = vmatprep.subr.bf16.mxu0 0
    %367 = vmatpush1.bf16.msra.mxu0 %v339
    %368 = vmatprep.subr.bf16.mxu0 0
    %369 = vmatpush1.bf16.msra.mxu0 %v338
    %370 = vmatprep.subr.bf16.mxu0 0
    %371 = vmatpush2.bf16.msra.mxu0 0
    %372 = vmatprep.subr.bf16.mxu0 0
    %373 = vmatpush2.bf16.msra.mxu0 0
    %374 = vmatprep.subr.bf16.mxu0 0
    %375 = vmatpush2.bf16.msra.mxu0 0
    %376 = vmatprep.subr.bf16.mxu0 0
    %377 = vmatpush2.bf16.msra.mxu0 0
    %378 = vmatprep.subr.bf16.mxu0 0
    %379 = vmatpush2.bf16.msra.mxu0 0
    %380 = vmatprep.subr.bf16.mxu0 0
    %381 = vmatpush2.bf16.msra.mxu0 0
    %382 = vmatprep.subr.bf16.mxu0 0
    %383 = vmatpush2.bf16.msra.mxu0 0
    %384 = vmatprep.subr.bf16.mxu0 0
    %385 = vmatpush2.bf16.msra.mxu0 0
    %386 = vmatprep.mubr.bf16.mxu0 0
    %387 = vmatmul.mubr.bf16.gmra.mxu0 %v282
    %v388 = vpop.f32.mrf.mxu0
    %v389 = vadd.f32 %v304, %v388
    %v390 = vpop.f32.mrf.mxu0
    %v391 = vpop.f32.mrf.mxu0
    %v392 = vpop.f32.mrf.mxu0
    %393 = vdwg.mxu0
    %v394 = vld [vmem:[#allocation10] sm:$0xf]
    %v395 = vld [vmem:[#allocation10 + $0x4] sm:$0xf]
    %v396 = vld [vmem:[#allocation10 + $0x8] sm:$0xf]
    %v397 = vld [vmem:[#allocation10 + $0xc] sm:$0xf]
    %v398 = vld [vmem:[#allocation10 + $0x10] sm:$0xf]
    %v399 = vld [vmem:[#allocation10 + $0x14] sm:$0xf]
    %v400 = vld [vmem:[#allocation10 + $0x18] sm:$0xf]
    %v401 = vld [vmem:[#allocation10 + $0x1c] sm:$0xf]
    %v402 = vld [vmem:[#allocation10 + $0x20] sm:$0xf]
    %v403 = vld [vmem:[#allocation10 + $0x24] sm:$0xf]
    %v404 = vld [vmem:[#allocation10 + $0x28] sm:$0xf]
    %v405 = vld [vmem:[#allocation10 + $0x2c] sm:$0xf]
    %v406 = vld [vmem:[#allocation10 + $0x30] sm:$0xf]
    %v407 = vld [vmem:[#allocation10 + $0x34] sm:$0xf]
    %v408 = vld [vmem:[#allocation10 + $0x38] sm:$0xf]
    %v409 = vld [vmem:[#allocation10 + $0x3c] sm:$0xf]
    %v410 = vld [vmem:[%s2] sm:$0x1]
    %v411 = vpack.c.bf16 %v410, %v410
    %v428 = vunpack.c.l.b16 %v394
    %v429 = vunpack.c.l.b16 %v395
    %v430 = vunpack.c.l.b16 %v396
    %v431 = vunpack.c.l.b16 %v397
    %v432 = vunpack.c.l.b16 %v398
    %v433 = vunpack.c.l.b16 %v399
    %v434 = vunpack.c.l.b16 %v400
    %v435 = vunpack.c.l.b16 %v401
    %v436 = vunpack.c.l.b16 %v402
    %v437 = vunpack.c.l.b16 %v403
    %v438 = vunpack.c.l.b16 %v404
    %v439 = vunpack.c.l.b16 %v405
    %v440 = vunpack.c.l.b16 %v406
    %v441 = vunpack.c.l.b16 %v407
    %v442 = vunpack.c.l.b16 %v408
    %v443 = vunpack.c.l.b16 %v409
    %v444 = vpack.c.b16 %v429, %v428
    %v445 = vpack.c.b16 %v431, %v430
    %v446 = vpack.c.b16 %v433, %v432
    %v447 = vpack.c.b16 %v435, %v434
    %v448 = vpack.c.b16 %v437, %v436
    %v449 = vpack.c.b16 %v439, %v438
    %v450 = vpack.c.b16 %v441, %v440
    %v451 = vpack.c.b16 %v443, %v442
    %460 = vmatprep.subr.bf16.mxu0 0
    %461 = vmatpush1.bf16.msra.mxu0 %v451
    %462 = vmatprep.subr.bf16.mxu0 0
    %463 = vmatpush1.bf16.msra.mxu0 %v450
    %464 = vmatprep.subr.bf16.mxu0 0
    %465 = vmatpush1.bf16.msra.mxu0 %v449
    %466 = vmatprep.subr.bf16.mxu0 0
    %467 = vmatpush1.bf16.msra.mxu0 %v448
    %468 = vmatprep.subr.bf16.mxu0 0
    %469 = vmatpush1.bf16.msra.mxu0 %v447
    %470 = vmatprep.subr.bf16.mxu0 0
    %471 = vmatpush1.bf16.msra.mxu0 %v446
    %472 = vmatprep.subr.bf16.mxu0 0
    %473 = vmatpush1.bf16.msra.mxu0 %v445
    %474 = vmatprep.subr.bf16.mxu0 0
    %475 = vmatpush1.bf16.msra.mxu0 %v444
    %476 = vmatprep.subr.bf16.mxu0 0
    %477 = vmatpush2.bf16.msra.mxu0 0
    %478 = vmatprep.subr.bf16.mxu0 0
    %479 = vmatpush2.bf16.msra.mxu0 0
    %480 = vmatprep.subr.bf16.mxu0 0
    %481 = vmatpush2.bf16.msra.mxu0 0
    %482 = vmatprep.subr.bf16.mxu0 0
    %483 = vmatpush2.bf16.msra.mxu0 0
    %484 = vmatprep.subr.bf16.mxu0 0
    %485 = vmatpush2.bf16.msra.mxu0 0
    %486 = vmatprep.subr.bf16.mxu0 0
    %487 = vmatpush2.bf16.msra.mxu0 0
    %488 = vmatprep.subr.bf16.mxu0 0
    %489 = vmatpush2.bf16.msra.mxu0 0
    %490 = vmatprep.subr.bf16.mxu0 0
    %491 = vmatpush2.bf16.msra.mxu0 0
    %492 = vmatprep.mubr.bf16.mxu0 0
    %493 = vmatmul.mubr.bf16.gmra.mxu0 %v411
    %v494 = vpop.f32.mrf.mxu0
    %v495 = vadd.f32 0.0, %v494
    %v496 = vpop.f32.mrf.mxu0
    %v497 = vpop.f32.mrf.mxu0
    %v498 = vpop.f32.mrf.mxu0
    %499 = vdwg.mxu0
    %v500 = vadd.f32 %v277, %v495
    %v501 = vtanh.pop %v500
    %502 = vst [vmem:[#allocation2] sm:$0x1] %v501
    %v503 = vpack.c.bf16 %v501, %v501
    %504 = vmatprep.subr.bf16.mxu0 0
    %505 = vmatpush1.bf16.msra.mxu0 %v451
    %506 = vmatprep.subr.bf16.mxu0 0
    %507 = vmatpush1.bf16.msra.mxu0 %v450
    %508 = vmatprep.subr.bf16.mxu0 0
    %509 = vmatpush1.bf16.msra.mxu0 %v449
    %510 = vmatprep.subr.bf16.mxu0 0
    %511 = vmatpush1.bf16.msra.mxu0 %v448
    %512 = vmatprep.subr.bf16.mxu0 0
    %513 = vmatpush1.bf16.msra.mxu0 %v447
    %514 = vmatprep.subr.bf16.mxu0 0
    %515 = vmatpush1.bf16.msra.mxu0 %v446
    %516 = vmatprep.subr.bf16.mxu0 0
    %517 = vmatpush1.bf16.msra.mxu0 %v445
    %518 = vmatprep.subr.bf16.mxu0 0
    %519 = vmatpush1.bf16.msra.mxu0 %v444
    %520 = vmatprep.subr.bf16.mxu0 0
    %521 = vmatpush2.bf16.msra.mxu0 0
    %522 = vmatprep.subr.bf16.mxu0 0
    %523 = vmatpush2.bf16.msra.mxu0 0
    %524 = vmatprep.subr.bf16.mxu0 0
    %525 = vmatpush2.bf16.msra.mxu0 0
    %526 = vmatprep.subr.bf16.mxu0 0
    %527 = vmatpush2.bf16.msra.mxu0 0
    %528 = vmatprep.subr.bf16.mxu0 0
    %529 = vmatpush2.bf16.msra.mxu0 0
    %530 = vmatprep.subr.bf16.mxu0 0
    %531 = vmatpush2.bf16.msra.mxu0 0
    %532 = vmatprep.subr.bf16.mxu0 0
    %533 = vmatpush2.bf16.msra.mxu0 0
    %534 = vmatprep.subr.bf16.mxu0 0
    %535 = vmatpush2.bf16.msra.mxu0 0
    %536 = vmatprep.mubr.bf16.mxu0 0
    %537 = vmatmul.mubr.bf16.gmra.mxu0 %v503
    %v538 = vpop.f32.mrf.mxu0
    %v539 = vadd.f32 0.0, %v538
    %v540 = vpop.f32.mrf.mxu0
    %v541 = vpop.f32.mrf.mxu0
    %v542 = vpop.f32.mrf.mxu0
    %543 = vdwg.mxu0
    %v545 = vrot.slane %v539, 7
    %v547 = vadd.f32 %v277, %v545
    %v548 = vtanh.pop %v547
    %549 = vst [vmem:[#allocation2] sm:$0x2] %v548
    %v550 = vpack.c.bf16 %v548, %v548
    %v552 = vshrl.u32 %v550, 16
    %555 = vmatprep.subr.bf16.mxu0 0
    %556 = vmatpush1.bf16.msra.mxu0 %v451
    %557 = vmatprep.subr.bf16.mxu0 0
    %558 = vmatpush1.bf16.msra.mxu0 %v450
    %559 = vmatprep.subr.bf16.mxu0 0
    %560 = vmatpush1.bf16.msra.mxu0 %v449
    %561 = vmatprep.subr.bf16.mxu0 0
    %562 = vmatpush1.bf16.msra.mxu0 %v448
    %563 = vmatprep.subr.bf16.mxu0 0
    %564 = vmatpush1.bf16.msra.mxu0 %v447
    %565 = vmatprep.subr.bf16.mxu0 0
    %566 = vmatpush1.bf16.msra.mxu0 %v446
    %567 = vmatprep.subr.bf16.mxu0 0
    %568 = vmatpush1.bf16.msra.mxu0 %v445
    %569 = vmatprep.subr.bf16.mxu0 0
    %570 = vmatpush1.bf16.msra.mxu0 %v444
    %571 = vmatprep.subr.bf16.mxu0 0
    %572 = vmatpush2.bf16.msra.mxu0 0
    %573 = vmatprep.subr.bf16.mxu0 0
    %574 = vmatpush2.bf16.msra.mxu0 0
    %575 = vmatprep.subr.bf16.mxu0 0
    %576 = vmatpush2.bf16.msra.mxu0 0
    %577 = vmatprep.subr.bf16.mxu0 0
    %578 = vmatpush2.bf16.msra.mxu0 0
    %579 = vmatprep.subr.bf16.mxu0 0
    %580 = vmatpush2.bf16.msra.mxu0 0
    %581 = vmatprep.subr.bf16.mxu0 0
    %582 = vmatpush2.bf16.msra.mxu0 0
    %583 = vmatprep.subr.bf16.mxu0 0
    %584 = vmatpush2.bf16.msra.mxu0 0
    %585 = vmatprep.subr.bf16.mxu0 0
    %586 = vmatpush2.bf16.msra.mxu0 0
    %587 = vmatprep.mubr.bf16.mxu0 0
    %588 = vmatmul.mubr.bf16.gmra.mxu0 %v552
    %v589 = vpop.f32.mrf.mxu0
    %v590 = vadd.f32 0.0, %v589
    %v591 = vpop.f32.mrf.mxu0
    %v592 = vpop.f32.mrf.mxu0
    %v593 = vpop.f32.mrf.mxu0
    %594 = vdwg.mxu0
    %v596 = vrot.slane %v590, 6
    %v598 = vadd.f32 %v277, %v596
    %v599 = vtanh.pop %v598
    %600 = vst [vmem:[#allocation2] sm:$0x4] %v599
    %v601 = vpack.c.bf16 %v599, %v599
    %v603 = vrot.slane %v601, 1
    %605 = vmatprep.subr.bf16.mxu0 0
    %606 = vmatpush1.bf16.msra.mxu0 %v451
    %607 = vmatprep.subr.bf16.mxu0 0
    %608 = vmatpush1.bf16.msra.mxu0 %v450
    %609 = vmatprep.subr.bf16.mxu0 0
    %610 = vmatpush1.bf16.msra.mxu0 %v449
    %611 = vmatprep.subr.bf16.mxu0 0
    %612 = vmatpush1.bf16.msra.mxu0 %v448
    %613 = vmatprep.subr.bf16.mxu0 0
    %614 = vmatpush1.bf16.msra.mxu0 %v447
    %615 = vmatprep.subr.bf16.mxu0 0
    %616 = vmatpush1.bf16.msra.mxu0 %v446
    %617 = vmatprep.subr.bf16.mxu0 0
    %618 = vmatpush1.bf16.msra.mxu0 %v445
    %619 = vmatprep.subr.bf16.mxu0 0
    %620 = vmatpush1.bf16.msra.mxu0 %v444
    %621 = vmatprep.subr.bf16.mxu0 0
    %622 = vmatpush2.bf16.msra.mxu0 0
    %623 = vmatprep.subr.bf16.mxu0 0
    %624 = vmatpush2.bf16.msra.mxu0 0
    %625 = vmatprep.subr.bf16.mxu0 0
    %626 = vmatpush2.bf16.msra.mxu0 0
    %627 = vmatprep.subr.bf16.mxu0 0
    %628 = vmatpush2.bf16.msra.mxu0 0
    %629 = vmatprep.subr.bf16.mxu0 0
    %630 = vmatpush2.bf16.msra.mxu0 0
    %631 = vmatprep.subr.bf16.mxu0 0
    %632 = vmatpush2.bf16.msra.mxu0 0
    %633 = vmatprep.subr.bf16.mxu0 0
    %634 = vmatpush2.bf16.msra.mxu0 0
    %635 = vmatprep.subr.bf16.mxu0 0
    %636 = vmatpush2.bf16.msra.mxu0 0
    %637 = vmatprep.mubr.bf16.mxu0 0
    %638 = vmatmul.mubr.bf16.gmra.mxu0 %v603
    %v639 = vpop.f32.mrf.mxu0
    %v640 = vadd.f32 0.0, %v639
    %v641 = vpop.f32.mrf.mxu0
    %v642 = vpop.f32.mrf.mxu0
    %v643 = vpop.f32.mrf.mxu0
    %644 = vdwg.mxu0
    %v646 = vrot.slane %v640, 5
    %v648 = vadd.f32 %v277, %v646
    %v649 = vtanh.pop %v648
    %650 = vst [vmem:[#allocation2] sm:$0x8] %v649
    %v651 = vpack.c.bf16 %v649, %v649
    %v653 = vshrl.u32 %v651, 16
    %v655 = vrot.slane %v653, 1
    %657 = vmatprep.subr.bf16.mxu0 0
    %658 = vmatpush1.bf16.msra.mxu0 %v451
    %659 = vmatprep.subr.bf16.mxu0 0
    %660 = vmatpush1.bf16.msra.mxu0 %v450
    %661 = vmatprep.subr.bf16.mxu0 0
    %662 = vmatpush1.bf16.msra.mxu0 %v449
    %663 = vmatprep.subr.bf16.mxu0 0
    %664 = vmatpush1.bf16.msra.mxu0 %v448
    %665 = vmatprep.subr.bf16.mxu0 0
    %666 = vmatpush1.bf16.msra.mxu0 %v447
    %667 = vmatprep.subr.bf16.mxu0 0
    %668 = vmatpush1.bf16.msra.mxu0 %v446
    %669 = vmatprep.subr.bf16.mxu0 0
    %670 = vmatpush1.bf16.msra.mxu0 %v445
    %671 = vmatprep.subr.bf16.mxu0 0
    %672 = vmatpush1.bf16.msra.mxu0 %v444
    %673 = vmatprep.subr.bf16.mxu0 0
    %674 = vmatpush2.bf16.msra.mxu0 0
    %675 = vmatprep.subr.bf16.mxu0 0
    %676 = vmatpush2.bf16.msra.mxu0 0
    %677 = vmatprep.subr.bf16.mxu0 0
    %678 = vmatpush2.bf16.msra.mxu0 0
    %679 = vmatprep.subr.bf16.mxu0 0
    %680 = vmatpush2.bf16.msra.mxu0 0
    %681 = vmatprep.subr.bf16.mxu0 0
    %682 = vmatpush2.bf16.msra.mxu0 0
    %683 = vmatprep.subr.bf16.mxu0 0
    %684 = vmatpush2.bf16.msra.mxu0 0
    %685 = vmatprep.subr.bf16.mxu0 0
    %686 = vmatpush2.bf16.msra.mxu0 0
    %687 = vmatprep.subr.bf16.mxu0 0
    %688 = vmatpush2.bf16.msra.mxu0 0
    %689 = vmatprep.mubr.bf16.mxu0 0
    %690 = vmatmul.mubr.bf16.gmra.mxu0 %v655
    %v691 = vpop.f32.mrf.mxu0
    %v692 = vadd.f32 0.0, %v691
    %v693 = vpop.f32.mrf.mxu0
    %v694 = vpop.f32.mrf.mxu0
    %v695 = vpop.f32.mrf.mxu0
    %696 = vdwg.mxu0
    %v698 = vrot.slane %v692, 4
    %v700 = vadd.f32 %v277, %v698
    %v701 = vtanh.pop %v700
    %702 = vst [vmem:[#allocation2] sm:$0x10] %v701
    %v703 = vpack.c.bf16 %v701, %v701
    %v705 = vrot.slane %v703, 2
    %707 = vmatprep.subr.bf16.mxu0 0
    %708 = vmatpush1.bf16.msra.mxu0 %v451
    %709 = vmatprep.subr.bf16.mxu0 0
    %710 = vmatpush1.bf16.msra.mxu0 %v450
    %711 = vmatprep.subr.bf16.mxu0 0
    %712 = vmatpush1.bf16.msra.mxu0 %v449
    %713 = vmatprep.subr.bf16.mxu0 0
    %714 = vmatpush1.bf16.msra.mxu0 %v448
    %715 = vmatprep.subr.bf16.mxu0 0
    %716 = vmatpush1.bf16.msra.mxu0 %v447
    %717 = vmatprep.subr.bf16.mxu0 0
    %718 = vmatpush1.bf16.msra.mxu0 %v446
    %719 = vmatprep.subr.bf16.mxu0 0
    %720 = vmatpush1.bf16.msra.mxu0 %v445
    %721 = vmatprep.subr.bf16.mxu0 0
    %722 = vmatpush1.bf16.msra.mxu0 %v444
    %723 = vmatprep.subr.bf16.mxu0 0
    %724 = vmatpush2.bf16.msra.mxu0 0
    %725 = vmatprep.subr.bf16.mxu0 0
    %726 = vmatpush2.bf16.msra.mxu0 0
    %727 = vmatprep.subr.bf16.mxu0 0
    %728 = vmatpush2.bf16.msra.mxu0 0
    %729 = vmatprep.subr.bf16.mxu0 0
    %730 = vmatpush2.bf16.msra.mxu0 0
    %731 = vmatprep.subr.bf16.mxu0 0
    %732 = vmatpush2.bf16.msra.mxu0 0
    %733 = vmatprep.subr.bf16.mxu0 0
    %734 = vmatpush2.bf16.msra.mxu0 0
    %735 = vmatprep.subr.bf16.mxu0 0
    %736 = vmatpush2.bf16.msra.mxu0 0
    %737 = vmatprep.subr.bf16.mxu0 0
    %738 = vmatpush2.bf16.msra.mxu0 0
    %739 = vmatprep.mubr.bf16.mxu0 0
    %740 = vmatmul.mubr.bf16.gmra.mxu0 %v705
    %v741 = vpop.f32.mrf.mxu0
    %v742 = vadd.f32 0.0, %v741
    %v743 = vpop.f32.mrf.mxu0
    %v744 = vpop.f32.mrf.mxu0
    %v745 = vpop.f32.mrf.mxu0
    %746 = vdwg.mxu0
    %v748 = vrot.slane %v742, 3
    %v750 = vadd.f32 %v277, %v748
    %v751 = vtanh.pop %v750
    %752 = vst [vmem:[#allocation2] sm:$0x20] %v751
    %v753 = vpack.c.bf16 %v751, %v751
    %v755 = vshrl.u32 %v753, 16
    %v757 = vrot.slane %v755, 2
    %759 = vmatprep.subr.bf16.mxu0 0
    %760 = vmatpush1.bf16.msra.mxu0 %v451
    %761 = vmatprep.subr.bf16.mxu0 0
    %762 = vmatpush1.bf16.msra.mxu0 %v450
    %763 = vmatprep.subr.bf16.mxu0 0
    %764 = vmatpush1.bf16.msra.mxu0 %v449
    %765 = vmatprep.subr.bf16.mxu0 0
    %766 = vmatpush1.bf16.msra.mxu0 %v448
    %767 = vmatprep.subr.bf16.mxu0 0
    %768 = vmatpush1.bf16.msra.mxu0 %v447
    %769 = vmatprep.subr.bf16.mxu0 0
    %770 = vmatpush1.bf16.msra.mxu0 %v446
    %771 = vmatprep.subr.bf16.mxu0 0
    %772 = vmatpush1.bf16.msra.mxu0 %v445
    %773 = vmatprep.subr.bf16.mxu0 0
    %774 = vmatpush1.bf16.msra.mxu0 %v444
    %775 = vmatprep.subr.bf16.mxu0 0
    %776 = vmatpush2.bf16.msra.mxu0 0
    %777 = vmatprep.subr.bf16.mxu0 0
    %778 = vmatpush2.bf16.msra.mxu0 0
    %779 = vmatprep.subr.bf16.mxu0 0
    %780 = vmatpush2.bf16.msra.mxu0 0
    %781 = vmatprep.subr.bf16.mxu0 0
    %782 = vmatpush2.bf16.msra.mxu0 0
    %783 = vmatprep.subr.bf16.mxu0 0
    %784 = vmatpush2.bf16.msra.mxu0 0
    %785 = vmatprep.subr.bf16.mxu0 0
    %786 = vmatpush2.bf16.msra.mxu0 0
    %787 = vmatprep.subr.bf16.mxu0 0
    %788 = vmatpush2.bf16.msra.mxu0 0
    %789 = vmatprep.subr.bf16.mxu0 0
    %790 = vmatpush2.bf16.msra.mxu0 0
    %791 = vmatprep.mubr.bf16.mxu0 0
    %792 = vmatmul.mubr.bf16.gmra.mxu0 %v757
    %v793 = vpop.f32.mrf.mxu0
    %v794 = vadd.f32 0.0, %v793
    %v795 = vpop.f32.mrf.mxu0
    %v796 = vpop.f32.mrf.mxu0
    %v797 = vpop.f32.mrf.mxu0
    %798 = vdwg.mxu0
    %v800 = vrot.slane %v794, 2
    %v802 = vadd.f32 %v277, %v800
    %v803 = vtanh.pop %v802
    %804 = vst [vmem:[#allocation2] sm:$0x40] %v803
    %v805 = vpack.c.bf16 %v803, %v803
    %v807 = vrot.slane %v805, 3
    %809 = vmatprep.subr.bf16.mxu0 0
    %810 = vmatpush1.bf16.msra.mxu0 %v451
    %811 = vmatprep.subr.bf16.mxu0 0
    %812 = vmatpush1.bf16.msra.mxu0 %v450
    %813 = vmatprep.subr.bf16.mxu0 0
    %814 = vmatpush1.bf16.msra.mxu0 %v449
    %815 = vmatprep.subr.bf16.mxu0 0
    %816 = vmatpush1.bf16.msra.mxu0 %v448
    %817 = vmatprep.subr.bf16.mxu0 0
    %818 = vmatpush1.bf16.msra.mxu0 %v447
    %819 = vmatprep.subr.bf16.mxu0 0
    %820 = vmatpush1.bf16.msra.mxu0 %v446
    %821 = vmatprep.subr.bf16.mxu0 0
    %822 = vmatpush1.bf16.msra.mxu0 %v445
    %823 = vmatprep.subr.bf16.mxu0 0
    %824 = vmatpush1.bf16.msra.mxu0 %v444
    %825 = vmatprep.subr.bf16.mxu0 0
    %826 = vmatpush2.bf16.msra.mxu0 0
    %827 = vmatprep.subr.bf16.mxu0 0
    %828 = vmatpush2.bf16.msra.mxu0 0
    %829 = vmatprep.subr.bf16.mxu0 0
    %830 = vmatpush2.bf16.msra.mxu0 0
    %831 = vmatprep.subr.bf16.mxu0 0
    %832 = vmatpush2.bf16.msra.mxu0 0
    %833 = vmatprep.subr.bf16.mxu0 0
    %834 = vmatpush2.bf16.msra.mxu0 0
    %835 = vmatprep.subr.bf16.mxu0 0
    %836 = vmatpush2.bf16.msra.mxu0 0
    %837 = vmatprep.subr.bf16.mxu0 0
    %838 = vmatpush2.bf16.msra.mxu0 0
    %839 = vmatprep.subr.bf16.mxu0 0
    %840 = vmatpush2.bf16.msra.mxu0 0
    %841 = vmatprep.mubr.bf16.mxu0 0
    %842 = vmatmul.mubr.bf16.gmra.mxu0 %v807
    %v843 = vpop.f32.mrf.mxu0
    %v844 = vadd.f32 0.0, %v843
    %v845 = vpop.f32.mrf.mxu0
    %v846 = vpop.f32.mrf.mxu0
    %v847 = vpop.f32.mrf.mxu0
    %848 = vdwg.mxu0
    %v850 = vrot.slane %v844, 1
    %v852 = vadd.f32 %v277, %v850
    %v853 = vtanh.pop %v852
    %854 = vst [vmem:[#allocation2] sm:$0x80] %v853
    %v855 = vld [vmem:[#allocation13] sm:$0xf]
    %v856 = vld [vmem:[#allocation13 + $0x4] sm:$0xf]
    %v857 = vld [vmem:[#allocation13 + $0x8] sm:$0xf]
    %v858 = vld [vmem:[#allocation13 + $0xc] sm:$0xf]
    %v859 = vld [vmem:[#allocation13 + $0x10] sm:$0xf]
    %v860 = vld [vmem:[#allocation13 + $0x14] sm:$0xf]
    %v861 = vld [vmem:[#allocation13 + $0x18] sm:$0xf]
    %v862 = vld [vmem:[#allocation13 + $0x1c] sm:$0xf]
    %v863 = vld [vmem:[#allocation13 + $0x20] sm:$0xf]
    %v864 = vld [vmem:[#allocation13 + $0x24] sm:$0xf]
    %v865 = vld [vmem:[#allocation13 + $0x28] sm:$0xf]
    %v866 = vld [vmem:[#allocation13 + $0x2c] sm:$0xf]
    %v867 = vld [vmem:[#allocation13 + $0x30] sm:$0xf]
    %v868 = vld [vmem:[#allocation13 + $0x34] sm:$0xf]
    %v869 = vld [vmem:[#allocation13 + $0x38] sm:$0xf]
    %v870 = vld [vmem:[#allocation13 + $0x3c] sm:$0xf]
    %v871 = vpack.c.bf16 %v853, %v853
    %v873 = vshrl.u32 %v871, 16
    %v875 = vrot.slane %v873, 3
    %v893 = vunpack.c.l.b16 %v855
    %v894 = vunpack.c.l.b16 %v856
    %v895 = vunpack.c.l.b16 %v857
    %v896 = vunpack.c.l.b16 %v858
    %v897 = vunpack.c.l.b16 %v859
    %v898 = vunpack.c.l.b16 %v860
    %v899 = vunpack.c.l.b16 %v861
    %v900 = vunpack.c.l.b16 %v862
    %v901 = vunpack.c.l.b16 %v863
    %v902 = vunpack.c.l.b16 %v864
    %v903 = vunpack.c.l.b16 %v865
    %v904 = vunpack.c.l.b16 %v866
    %v905 = vunpack.c.l.b16 %v867
    %v906 = vunpack.c.l.b16 %v868
    %v907 = vunpack.c.l.b16 %v869
    %v908 = vunpack.c.l.b16 %v870
    %v909 = vpack.c.b16 %v894, %v893
    %v910 = vpack.c.b16 %v896, %v895
    %v911 = vpack.c.b16 %v898, %v897
    %v912 = vpack.c.b16 %v900, %v899
    %v913 = vpack.c.b16 %v902, %v901
    %v914 = vpack.c.b16 %v904, %v903
    %v915 = vpack.c.b16 %v906, %v905
    %v916 = vpack.c.b16 %v908, %v907
    %925 = vmatprep.subr.bf16.mxu0 0
    %926 = vmatpush1.bf16.msra.mxu0 %v916
    %927 = vmatprep.subr.bf16.mxu0 0
    %928 = vmatpush1.bf16.msra.mxu0 %v915
    %929 = vmatprep.subr.bf16.mxu0 0
    %930 = vmatpush1.bf16.msra.mxu0 %v914
    %931 = vmatprep.subr.bf16.mxu0 0
    %932 = vmatpush1.bf16.msra.mxu0 %v913
    %933 = vmatprep.subr.bf16.mxu0 0
    %934 = vmatpush1.bf16.msra.mxu0 %v912
    %935 = vmatprep.subr.bf16.mxu0 0
    %936 = vmatpush1.bf16.msra.mxu0 %v911
    %937 = vmatprep.subr.bf16.mxu0 0
    %938 = vmatpush1.bf16.msra.mxu0 %v910
    %939 = vmatprep.subr.bf16.mxu0 0
    %940 = vmatpush1.bf16.msra.mxu0 %v909
    %941 = vmatprep.subr.bf16.mxu0 0
    %942 = vmatpush2.bf16.msra.mxu0 0
    %943 = vmatprep.subr.bf16.mxu0 0
    %944 = vmatpush2.bf16.msra.mxu0 0
    %945 = vmatprep.subr.bf16.mxu0 0
    %946 = vmatpush2.bf16.msra.mxu0 0
    %947 = vmatprep.subr.bf16.mxu0 0
    %948 = vmatpush2.bf16.msra.mxu0 0
    %949 = vmatprep.subr.bf16.mxu0 0
    %950 = vmatpush2.bf16.msra.mxu0 0
    %951 = vmatprep.subr.bf16.mxu0 0
    %952 = vmatpush2.bf16.msra.mxu0 0
    %953 = vmatprep.subr.bf16.mxu0 0
    %954 = vmatpush2.bf16.msra.mxu0 0
    %955 = vmatprep.subr.bf16.mxu0 0
    %956 = vmatpush2.bf16.msra.mxu0 0
    %957 = vmatprep.mubr.bf16.mxu0 0
    %958 = vmatmul.mubr.bf16.gmra.mxu0 %v875
    %v959 = vpop.f32.mrf.mxu0
    %v960 = vadd.f32 0.0, %v959
    %v961 = vpop.f32.mrf.mxu0
    %v962 = vpop.f32.mrf.mxu0
    %v963 = vpop.f32.mrf.mxu0
    %964 = vdwg.mxu0
    %v965 = vadd.f32 %v389, %v960
    %v966 = vtanh.pop %v965
    %967 = vst [vmem:[#allocation3] sm:$0x1] %v966
    %v968 = vpack.c.bf16 %v966, %v966
    %969 = vmatprep.subr.bf16.mxu0 0
    %970 = vmatpush1.bf16.msra.mxu0 %v916
    %971 = vmatprep.subr.bf16.mxu0 0
    %972 = vmatpush1.bf16.msra.mxu0 %v915
    %973 = vmatprep.subr.bf16.mxu0 0
    %974 = vmatpush1.bf16.msra.mxu0 %v914
    %975 = vmatprep.subr.bf16.mxu0 0
    %976 = vmatpush1.bf16.msra.mxu0 %v913
    %977 = vmatprep.subr.bf16.mxu0 0
    %978 = vmatpush1.bf16.msra.mxu0 %v912
    %979 = vmatprep.subr.bf16.mxu0 0
    %980 = vmatpush1.bf16.msra.mxu0 %v911
    %981 = vmatprep.subr.bf16.mxu0 0
    %982 = vmatpush1.bf16.msra.mxu0 %v910
    %983 = vmatprep.subr.bf16.mxu0 0
    %984 = vmatpush1.bf16.msra.mxu0 %v909
    %985 = vmatprep.subr.bf16.mxu0 0
    %986 = vmatpush2.bf16.msra.mxu0 0
    %987 = vmatprep.subr.bf16.mxu0 0
    %988 = vmatpush2.bf16.msra.mxu0 0
    %989 = vmatprep.subr.bf16.mxu0 0
    %990 = vmatpush2.bf16.msra.mxu0 0
    %991 = vmatprep.subr.bf16.mxu0 0
    %992 = vmatpush2.bf16.msra.mxu0 0
    %993 = vmatprep.subr.bf16.mxu0 0
    %994 = vmatpush2.bf16.msra.mxu0 0
    %995 = vmatprep.subr.bf16.mxu0 0
    %996 = vmatpush2.bf16.msra.mxu0 0
    %997 = vmatprep.subr.bf16.mxu0 0
    %998 = vmatpush2.bf16.msra.mxu0 0
    %999 = vmatprep.subr.bf16.mxu0 0
    %1000 = vmatpush2.bf16.msra.mxu0 0
    %1001 = vmatprep.mubr.bf16.mxu0 0
    %1002 = vmatmul.mubr.bf16.gmra.mxu0 %v968
    %v1003 = vpop.f32.mrf.mxu0
    %v1004 = vadd.f32 0.0, %v1003
    %v1005 = vpop.f32.mrf.mxu0
    %v1006 = vpop.f32.mrf.mxu0
    %v1007 = vpop.f32.mrf.mxu0
    %1008 = vdwg.mxu0
    %v1010 = vrot.slane %v1004, 7
    %v1012 = vadd.f32 %v389, %v1010
    %v1013 = vtanh.pop %v1012
    %1014 = vst [vmem:[#allocation3] sm:$0x2] %v1013
    %v1015 = vpack.c.bf16 %v1013, %v1013
    %v1017 = vshrl.u32 %v1015, 16
    %1020 = vmatprep.subr.bf16.mxu0 0
    %1021 = vmatpush1.bf16.msra.mxu0 %v916
    %1022 = vmatprep.subr.bf16.mxu0 0
    %1023 = vmatpush1.bf16.msra.mxu0 %v915
    %1024 = vmatprep.subr.bf16.mxu0 0
    %1025 = vmatpush1.bf16.msra.mxu0 %v914
    %1026 = vmatprep.subr.bf16.mxu0 0
    %1027 = vmatpush1.bf16.msra.mxu0 %v913
    %1028 = vmatprep.subr.bf16.mxu0 0
    %1029 = vmatpush1.bf16.msra.mxu0 %v912
    %1030 = vmatprep.subr.bf16.mxu0 0
    %1031 = vmatpush1.bf16.msra.mxu0 %v911
    %1032 = vmatprep.subr.bf16.mxu0 0
    %1033 = vmatpush1.bf16.msra.mxu0 %v910
    %1034 = vmatprep.subr.bf16.mxu0 0
    %1035 = vmatpush1.bf16.msra.mxu0 %v909
    %1036 = vmatprep.subr.bf16.mxu0 0
    %1037 = vmatpush2.bf16.msra.mxu0 0
    %1038 = vmatprep.subr.bf16.mxu0 0
    %1039 = vmatpush2.bf16.msra.mxu0 0
    %1040 = vmatprep.subr.bf16.mxu0 0
    %1041 = vmatpush2.bf16.msra.mxu0 0
    %1042 = vmatprep.subr.bf16.mxu0 0
    %1043 = vmatpush2.bf16.msra.mxu0 0
    %1044 = vmatprep.subr.bf16.mxu0 0
    %1045 = vmatpush2.bf16.msra.mxu0 0
    %1046 = vmatprep.subr.bf16.mxu0 0
    %1047 = vmatpush2.bf16.msra.mxu0 0
    %1048 = vmatprep.subr.bf16.mxu0 0
    %1049 = vmatpush2.bf16.msra.mxu0 0
    %1050 = vmatprep.subr.bf16.mxu0 0
    %1051 = vmatpush2.bf16.msra.mxu0 0
    %1052 = vmatprep.mubr.bf16.mxu0 0
    %1053 = vmatmul.mubr.bf16.gmra.mxu0 %v1017
    %v1054 = vpop.f32.mrf.mxu0
    %v1055 = vadd.f32 0.0, %v1054
    %v1056 = vpop.f32.mrf.mxu0
    %v1057 = vpop.f32.mrf.mxu0
    %v1058 = vpop.f32.mrf.mxu0
    %1059 = vdwg.mxu0
    %v1061 = vrot.slane %v1055, 6
    %v1063 = vadd.f32 %v389, %v1061
    %v1064 = vtanh.pop %v1063
    %1065 = vst [vmem:[#allocation3] sm:$0x4] %v1064
    %v1066 = vpack.c.bf16 %v1064, %v1064
    %v1068 = vrot.slane %v1066, 1
    %1070 = vmatprep.subr.bf16.mxu0 0
    %1071 = vmatpush1.bf16.msra.mxu0 %v916
    %1072 = vmatprep.subr.bf16.mxu0 0
    %1073 = vmatpush1.bf16.msra.mxu0 %v915
    %1074 = vmatprep.subr.bf16.mxu0 0
    %1075 = vmatpush1.bf16.msra.mxu0 %v914
    %1076 = vmatprep.subr.bf16.mxu0 0
    %1077 = vmatpush1.bf16.msra.mxu0 %v913
    %1078 = vmatprep.subr.bf16.mxu0 0
    %1079 = vmatpush1.bf16.msra.mxu0 %v912
    %1080 = vmatprep.subr.bf16.mxu0 0
    %1081 = vmatpush1.bf16.msra.mxu0 %v911
    %1082 = vmatprep.subr.bf16.mxu0 0
    %1083 = vmatpush1.bf16.msra.mxu0 %v910
    %1084 = vmatprep.subr.bf16.mxu0 0
    %1085 = vmatpush1.bf16.msra.mxu0 %v909
    %1086 = vmatprep.subr.bf16.mxu0 0
    %1087 = vmatpush2.bf16.msra.mxu0 0
    %1088 = vmatprep.subr.bf16.mxu0 0
    %1089 = vmatpush2.bf16.msra.mxu0 0
    %1090 = vmatprep.subr.bf16.mxu0 0
    %1091 = vmatpush2.bf16.msra.mxu0 0
    %1092 = vmatprep.subr.bf16.mxu0 0
    %1093 = vmatpush2.bf16.msra.mxu0 0
    %1094 = vmatprep.subr.bf16.mxu0 0
    %1095 = vmatpush2.bf16.msra.mxu0 0
    %1096 = vmatprep.subr.bf16.mxu0 0
    %1097 = vmatpush2.bf16.msra.mxu0 0
    %1098 = vmatprep.subr.bf16.mxu0 0
    %1099 = vmatpush2.bf16.msra.mxu0 0
    %1100 = vmatprep.subr.bf16.mxu0 0
    %1101 = vmatpush2.bf16.msra.mxu0 0
    %1102 = vmatprep.mubr.bf16.mxu0 0
    %1103 = vmatmul.mubr.bf16.gmra.mxu0 %v1068
    %v1104 = vpop.f32.mrf.mxu0
    %v1105 = vadd.f32 0.0, %v1104
    %v1106 = vpop.f32.mrf.mxu0
    %v1107 = vpop.f32.mrf.mxu0
    %v1108 = vpop.f32.mrf.mxu0
    %1109 = vdwg.mxu0
    %v1111 = vrot.slane %v1105, 5
    %v1113 = vadd.f32 %v389, %v1111
    %v1114 = vtanh.pop %v1113
    %1115 = vst [vmem:[#allocation3] sm:$0x8] %v1114
    %v1116 = vpack.c.bf16 %v1114, %v1114
    %v1118 = vshrl.u32 %v1116, 16
    %v1120 = vrot.slane %v1118, 1
    %1122 = vmatprep.subr.bf16.mxu0 0
    %1123 = vmatpush1.bf16.msra.mxu0 %v916
    %1124 = vmatprep.subr.bf16.mxu0 0
    %1125 = vmatpush1.bf16.msra.mxu0 %v915
    %1126 = vmatprep.subr.bf16.mxu0 0
    %1127 = vmatpush1.bf16.msra.mxu0 %v914
    %1128 = vmatprep.subr.bf16.mxu0 0
    %1129 = vmatpush1.bf16.msra.mxu0 %v913
    %1130 = vmatprep.subr.bf16.mxu0 0
    %1131 = vmatpush1.bf16.msra.mxu0 %v912
    %1132 = vmatprep.subr.bf16.mxu0 0
    %1133 = vmatpush1.bf16.msra.mxu0 %v911
    %1134 = vmatprep.subr.bf16.mxu0 0
    %1135 = vmatpush1.bf16.msra.mxu0 %v910
    %1136 = vmatprep.subr.bf16.mxu0 0
    %1137 = vmatpush1.bf16.msra.mxu0 %v909
    %1138 = vmatprep.subr.bf16.mxu0 0
    %1139 = vmatpush2.bf16.msra.mxu0 0
    %1140 = vmatprep.subr.bf16.mxu0 0
    %1141 = vmatpush2.bf16.msra.mxu0 0
    %1142 = vmatprep.subr.bf16.mxu0 0
    %1143 = vmatpush2.bf16.msra.mxu0 0
    %1144 = vmatprep.subr.bf16.mxu0 0
    %1145 = vmatpush2.bf16.msra.mxu0 0
    %1146 = vmatprep.subr.bf16.mxu0 0
    %1147 = vmatpush2.bf16.msra.mxu0 0
    %1148 = vmatprep.subr.bf16.mxu0 0
    %1149 = vmatpush2.bf16.msra.mxu0 0
    %1150 = vmatprep.subr.bf16.mxu0 0
    %1151 = vmatpush2.bf16.msra.mxu0 0
    %1152 = vmatprep.subr.bf16.mxu0 0
    %1153 = vmatpush2.bf16.msra.mxu0 0
    %1154 = vmatprep.mubr.bf16.mxu0 0
    %1155 = vmatmul.mubr.bf16.gmra.mxu0 %v1120
    %v1156 = vpop.f32.mrf.mxu0
    %v1157 = vadd.f32 0.0, %v1156
    %v1158 = vpop.f32.mrf.mxu0
    %v1159 = vpop.f32.mrf.mxu0
    %v1160 = vpop.f32.mrf.mxu0
    %1161 = vdwg.mxu0
    %v1163 = vrot.slane %v1157, 4
    %v1165 = vadd.f32 %v389, %v1163
    %v1166 = vtanh.pop %v1165
    %1167 = vst [vmem:[#allocation3] sm:$0x10] %v1166
    %v1168 = vpack.c.bf16 %v1166, %v1166
    %v1170 = vrot.slane %v1168, 2
    %1172 = vmatprep.subr.bf16.mxu0 0
    %1173 = vmatpush1.bf16.msra.mxu0 %v916
    %1174 = vmatprep.subr.bf16.mxu0 0
    %1175 = vmatpush1.bf16.msra.mxu0 %v915
    %1176 = vmatprep.subr.bf16.mxu0 0
    %1177 = vmatpush1.bf16.msra.mxu0 %v914
    %1178 = vmatprep.subr.bf16.mxu0 0
    %1179 = vmatpush1.bf16.msra.mxu0 %v913
    %1180 = vmatprep.subr.bf16.mxu0 0
    %1181 = vmatpush1.bf16.msra.mxu0 %v912
    %1182 = vmatprep.subr.bf16.mxu0 0
    %1183 = vmatpush1.bf16.msra.mxu0 %v911
    %1184 = vmatprep.subr.bf16.mxu0 0
    %1185 = vmatpush1.bf16.msra.mxu0 %v910
    %1186 = vmatprep.subr.bf16.mxu0 0
    %1187 = vmatpush1.bf16.msra.mxu0 %v909
    %1188 = vmatprep.subr.bf16.mxu0 0
    %1189 = vmatpush2.bf16.msra.mxu0 0
    %1190 = vmatprep.subr.bf16.mxu0 0
    %1191 = vmatpush2.bf16.msra.mxu0 0
    %1192 = vmatprep.subr.bf16.mxu0 0
    %1193 = vmatpush2.bf16.msra.mxu0 0
    %1194 = vmatprep.subr.bf16.mxu0 0
    %1195 = vmatpush2.bf16.msra.mxu0 0
    %1196 = vmatprep.subr.bf16.mxu0 0
    %1197 = vmatpush2.bf16.msra.mxu0 0
    %1198 = vmatprep.subr.bf16.mxu0 0
    %1199 = vmatpush2.bf16.msra.mxu0 0
    %1200 = vmatprep.subr.bf16.mxu0 0
    %1201 = vmatpush2.bf16.msra.mxu0 0
    %1202 = vmatprep.subr.bf16.mxu0 0
    %1203 = vmatpush2.bf16.msra.mxu0 0
    %1204 = vmatprep.mubr.bf16.mxu0 0
    %1205 = vmatmul.mubr.bf16.gmra.mxu0 %v1170
    %v1206 = vpop.f32.mrf.mxu0
    %v1207 = vadd.f32 0.0, %v1206
    %v1208 = vpop.f32.mrf.mxu0
    %v1209 = vpop.f32.mrf.mxu0
    %v1210 = vpop.f32.mrf.mxu0
    %1211 = vdwg.mxu0
    %v1213 = vrot.slane %v1207, 3
    %v1215 = vadd.f32 %v389, %v1213
    %v1216 = vtanh.pop %v1215
    %1217 = vst [vmem:[#allocation3] sm:$0x20] %v1216
    %v1218 = vpack.c.bf16 %v1216, %v1216
    %v1220 = vshrl.u32 %v1218, 16
    %v1222 = vrot.slane %v1220, 2
    %1224 = vmatprep.subr.bf16.mxu0 0
    %1225 = vmatpush1.bf16.msra.mxu0 %v916
    %1226 = vmatprep.subr.bf16.mxu0 0
    %1227 = vmatpush1.bf16.msra.mxu0 %v915
    %1228 = vmatprep.subr.bf16.mxu0 0
    %1229 = vmatpush1.bf16.msra.mxu0 %v914
    %1230 = vmatprep.subr.bf16.mxu0 0
    %1231 = vmatpush1.bf16.msra.mxu0 %v913
    %1232 = vmatprep.subr.bf16.mxu0 0
    %1233 = vmatpush1.bf16.msra.mxu0 %v912
    %1234 = vmatprep.subr.bf16.mxu0 0
    %1235 = vmatpush1.bf16.msra.mxu0 %v911
    %1236 = vmatprep.subr.bf16.mxu0 0
    %1237 = vmatpush1.bf16.msra.mxu0 %v910
    %1238 = vmatprep.subr.bf16.mxu0 0
    %1239 = vmatpush1.bf16.msra.mxu0 %v909
    %1240 = vmatprep.subr.bf16.mxu0 0
    %1241 = vmatpush2.bf16.msra.mxu0 0
    %1242 = vmatprep.subr.bf16.mxu0 0
    %1243 = vmatpush2.bf16.msra.mxu0 0
    %1244 = vmatprep.subr.bf16.mxu0 0
    %1245 = vmatpush2.bf16.msra.mxu0 0
    %1246 = vmatprep.subr.bf16.mxu0 0
    %1247 = vmatpush2.bf16.msra.mxu0 0
    %1248 = vmatprep.subr.bf16.mxu0 0
    %1249 = vmatpush2.bf16.msra.mxu0 0
    %1250 = vmatprep.subr.bf16.mxu0 0
    %1251 = vmatpush2.bf16.msra.mxu0 0
    %1252 = vmatprep.subr.bf16.mxu0 0
    %1253 = vmatpush2.bf16.msra.mxu0 0
    %1254 = vmatprep.subr.bf16.mxu0 0
    %1255 = vmatpush2.bf16.msra.mxu0 0
    %1256 = vmatprep.mubr.bf16.mxu0 0
    %1257 = vmatmul.mubr.bf16.gmra.mxu0 %v1222
    %v1258 = vpop.f32.mrf.mxu0
    %v1259 = vadd.f32 0.0, %v1258
    %v1260 = vpop.f32.mrf.mxu0
    %v1261 = vpop.f32.mrf.mxu0
    %v1262 = vpop.f32.mrf.mxu0
    %1263 = vdwg.mxu0
    %v1265 = vrot.slane %v1259, 2
    %v1267 = vadd.f32 %v389, %v1265
    %v1268 = vtanh.pop %v1267
    %1269 = vst [vmem:[#allocation3] sm:$0x40] %v1268
    %v1270 = vpack.c.bf16 %v1268, %v1268
    %v1272 = vrot.slane %v1270, 3
    %1274 = vmatprep.subr.bf16.mxu0 0
    %1275 = vmatpush1.bf16.msra.mxu0 %v916
    %1276 = vmatprep.subr.bf16.mxu0 0
    %1277 = vmatpush1.bf16.msra.mxu0 %v915
    %1278 = vmatprep.subr.bf16.mxu0 0
    %1279 = vmatpush1.bf16.msra.mxu0 %v914
    %1280 = vmatprep.subr.bf16.mxu0 0
    %1281 = vmatpush1.bf16.msra.mxu0 %v913
    %1282 = vmatprep.subr.bf16.mxu0 0
    %1283 = vmatpush1.bf16.msra.mxu0 %v912
    %1284 = vmatprep.subr.bf16.mxu0 0
    %1285 = vmatpush1.bf16.msra.mxu0 %v911
    %1286 = vmatprep.subr.bf16.mxu0 0
    %1287 = vmatpush1.bf16.msra.mxu0 %v910
    %1288 = vmatprep.subr.bf16.mxu0 0
    %1289 = vmatpush1.bf16.msra.mxu0 %v909
    %1290 = vmatprep.subr.bf16.mxu0 0
    %1291 = vmatpush2.bf16.msra.mxu0 0
    %1292 = vmatprep.subr.bf16.mxu0 0
    %1293 = vmatpush2.bf16.msra.mxu0 0
    %1294 = vmatprep.subr.bf16.mxu0 0
    %1295 = vmatpush2.bf16.msra.mxu0 0
    %1296 = vmatprep.subr.bf16.mxu0 0
    %1297 = vmatpush2.bf16.msra.mxu0 0
    %1298 = vmatprep.subr.bf16.mxu0 0
    %1299 = vmatpush2.bf16.msra.mxu0 0
    %1300 = vmatprep.subr.bf16.mxu0 0
    %1301 = vmatpush2.bf16.msra.mxu0 0
    %1302 = vmatprep.subr.bf16.mxu0 0
    %1303 = vmatpush2.bf16.msra.mxu0 0
    %1304 = vmatprep.subr.bf16.mxu0 0
    %1305 = vmatpush2.bf16.msra.mxu0 0
    %1306 = vmatprep.mubr.bf16.mxu0 0
    %1307 = vmatmul.mubr.bf16.gmra.mxu0 %v1272
    %v1308 = vpop.f32.mrf.mxu0
    %v1309 = vadd.f32 0.0, %v1308
    %v1310 = vpop.f32.mrf.mxu0
    %v1311 = vpop.f32.mrf.mxu0
    %v1312 = vpop.f32.mrf.mxu0
    %1313 = vdwg.mxu0
    %v1315 = vrot.slane %v1309, 1
    %v1317 = vadd.f32 %v389, %v1315
    %v1318 = vtanh.pop %v1317
    %1319 = vst [vmem:[#allocation3] sm:$0x80] %v1318
    %v1320 = vld [vmem:[#allocation2] sm:$0xff]
    %v1321 = vld [vmem:[#allocation3] sm:$0xff]
    %v1322 = vpack.c.bf16 %v1320, %v1320
    %v1323 = vpack.c.bf16 %v1321, %v1321
    %v1324 = vld [vmem:[#allocation15] sm:$0xf]
    %v1325 = vld [vmem:[#allocation15 + $0x4] sm:$0xf]
    %v1326 = vld [vmem:[#allocation15 + $0x8] sm:$0xf]
    %v1327 = vld [vmem:[#allocation15 + $0xc] sm:$0xf]
    %v1328 = vld [vmem:[#allocation15 + $0x10] sm:$0xf]
    %v1329 = vld [vmem:[#allocation15 + $0x14] sm:$0xf]
    %v1330 = vld [vmem:[#allocation15 + $0x18] sm:$0xf]
    %v1331 = vld [vmem:[#allocation15 + $0x1c] sm:$0xf]
    %v1332 = vld [vmem:[#allocation15 + $0x20] sm:$0xf]
    %v1333 = vld [vmem:[#allocation15 + $0x24] sm:$0xf]
    %v1334 = vld [vmem:[#allocation15 + $0x28] sm:$0xf]
    %v1335 = vld [vmem:[#allocation15 + $0x2c] sm:$0xf]
    %v1336 = vld [vmem:[#allocation15 + $0x30] sm:$0xf]
    %v1337 = vld [vmem:[#allocation15 + $0x34] sm:$0xf]
    %v1338 = vld [vmem:[#allocation15 + $0x38] sm:$0xf]
    %v1339 = vld [vmem:[#allocation15 + $0x3c] sm:$0xf]
    %v1340 = vld [vmem:[%s10] sm:$0x1]
    %v1342 = vlaneseq
    %v1343 = vshrl.u32 %v1342, 7
    %v1344 = vsub.s32 0, %v1343
    %v1345 = vrot.slane %v1340, %v1344
    %v1363 = vunpack.c.l.b16 %v1324
    %v1364 = vunpack.c.l.b16 %v1325
    %v1365 = vunpack.c.l.b16 %v1326
    %v1366 = vunpack.c.l.b16 %v1327
    %v1367 = vunpack.c.l.b16 %v1328
    %v1368 = vunpack.c.l.b16 %v1329
    %v1369 = vunpack.c.l.b16 %v1330
    %v1370 = vunpack.c.l.b16 %v1331
    %v1371 = vunpack.c.l.b16 %v1332
    %v1372 = vunpack.c.l.b16 %v1333
    %v1373 = vunpack.c.l.b16 %v1334
    %v1374 = vunpack.c.l.b16 %v1335
    %v1375 = vunpack.c.l.b16 %v1336
    %v1376 = vunpack.c.l.b16 %v1337
    %v1377 = vunpack.c.l.b16 %v1338
    %v1378 = vunpack.c.l.b16 %v1339
    %v1379 = vpack.c.b16 %v1364, %v1363
    %v1380 = vpack.c.b16 %v1366, %v1365
    %v1381 = vpack.c.b16 %v1368, %v1367
    %v1382 = vpack.c.b16 %v1370, %v1369
    %v1383 = vpack.c.b16 %v1372, %v1371
    %v1384 = vpack.c.b16 %v1374, %v1373
    %v1385 = vpack.c.b16 %v1376, %v1375
    %v1386 = vpack.c.b16 %v1378, %v1377
    %1395 = vmatprep.subr.bf16.mxu0 0
    %1396 = vmatpush1.bf16.msra.mxu0 %v1386
    %1397 = vmatprep.subr.bf16.mxu0 0
    %1398 = vmatpush1.bf16.msra.mxu0 %v1385
    %1399 = vmatprep.subr.bf16.mxu0 0
    %1400 = vmatpush1.bf16.msra.mxu0 %v1384
    %1401 = vmatprep.subr.bf16.mxu0 0
    %1402 = vmatpush1.bf16.msra.mxu0 %v1383
    %1403 = vmatprep.subr.bf16.mxu0 0
    %1404 = vmatpush1.bf16.msra.mxu0 %v1382
    %1405 = vmatprep.subr.bf16.mxu0 0
    %1406 = vmatpush1.bf16.msra.mxu0 %v1381
    %1407 = vmatprep.subr.bf16.mxu0 0
    %1408 = vmatpush1.bf16.msra.mxu0 %v1380
    %1409 = vmatprep.subr.bf16.mxu0 0
    %1410 = vmatpush1.bf16.msra.mxu0 %v1379
    %1411 = vmatprep.subr.bf16.mxu0 0
    %1412 = vmatpush2.bf16.msra.mxu0 0
    %1413 = vmatprep.subr.bf16.mxu0 0
    %1414 = vmatpush2.bf16.msra.mxu0 0
    %1415 = vmatprep.subr.bf16.mxu0 0
    %1416 = vmatpush2.bf16.msra.mxu0 0
    %1417 = vmatprep.subr.bf16.mxu0 0
    %1418 = vmatpush2.bf16.msra.mxu0 0
    %1419 = vmatprep.subr.bf16.mxu0 0
    %1420 = vmatpush2.bf16.msra.mxu0 0
    %1421 = vmatprep.subr.bf16.mxu0 0
    %1422 = vmatpush2.bf16.msra.mxu0 0
    %1423 = vmatprep.subr.bf16.mxu0 0
    %1424 = vmatpush2.bf16.msra.mxu0 0
    %1425 = vmatprep.subr.bf16.mxu0 0
    %1426 = vmatpush2.bf16.msra.mxu0 0
    %1427 = vmatprep.mubr.bf16.mxu0 0
    %1428 = vmatmul.mubr.bf16.gmra.mxu0 %v1322
    %v1429 = vpop.f32.mrf.mxu0
    %v1430 = vadd.f32 %v1345, %v1429
    %v1431 = vpop.f32.mrf.mxu0
    %v1432 = vpop.f32.mrf.mxu0
    %v1433 = vpop.f32.mrf.mxu0
    %1434 = vdwg.mxu0
    %v1435 = vpack.c.bf16 %v1430, %v1430
    %1436 = vmatprep.subr.bf16.mxu0 0
    %1437 = vmatpush1.bf16.xpose.msra.mxu0 0
    %1438 = vmatprep.subr.bf16.mxu0 0
    %1439 = vmatpush1.bf16.xpose.msra.mxu0 0
    %1440 = vmatprep.subr.bf16.mxu0 0
    %1441 = vmatpush1.bf16.xpose.msra.mxu0 0
    %1442 = vmatprep.subr.bf16.mxu0 0
    %1443 = vmatpush1.bf16.xpose.msra.mxu0 0
    %1444 = vmatprep.subr.bf16.mxu0 0
    %1445 = vmatpush1.bf16.xpose.msra.mxu0 0
    %1446 = vmatprep.subr.bf16.mxu0 0
    %1447 = vmatpush1.bf16.xpose.msra.mxu0 0
    %1448 = vmatprep.subr.bf16.mxu0 0
    %1449 = vmatpush1.bf16.xpose.msra.mxu0 0
    %1450 = vmatprep.subr.bf16.mxu0 0
    %1451 = vmatpush1.bf16.xpose.msra.mxu0 %v1435
    %1452 = vmatprep.subr.bf16.mxu0 0
    %1453 = vmatpush2.bf16.xpose.msra.mxu0 0
    %1454 = vmatprep.subr.bf16.mxu0 0
    %1455 = vmatpush2.bf16.xpose.msra.mxu0 0
    %1456 = vmatprep.subr.bf16.mxu0 0
    %1457 = vmatpush2.bf16.xpose.msra.mxu0 0
    %1458 = vmatprep.subr.bf16.mxu0 0
    %1459 = vmatpush2.bf16.xpose.msra.mxu0 0
    %1460 = vmatprep.subr.bf16.mxu0 0
    %1461 = vmatpush2.bf16.xpose.msra.mxu0 0
    %1462 = vmatprep.subr.bf16.mxu0 0
    %1463 = vmatpush2.bf16.xpose.msra.mxu0 0
    %1464 = vmatprep.subr.bf16.mxu0 0
    %1465 = vmatpush2.bf16.xpose.msra.mxu0 0
    %1466 = vmatprep.subr.bf16.mxu0 0
    %1467 = vmatpush2.bf16.xpose.msra.mxu0 0
    %1468 = vmatprep.mubr.bf16.mxu0 0
    %1469 = vmatmul.mubr.bf16.gmra.mxu0 %v1323
    %v1470 = vpop.f32.mrf.mxu0
    %v1471 = vadd.f32 0.0, %v1470
    %v1472 = vpop.f32.mrf.mxu0
    %v1473 = vpop.f32.mrf.mxu0
    %v1474 = vpop.f32.mrf.mxu0
    %1475 = vdwg.mxu0
    %vm1476 = vcmask 64512
    %v1477 = vsel %vm1476, %v1471, -inf
    %1478 = vmax.xlane.f32.xlu0 %v1477
    %v1479 = vpop.xlane.xlu0 %1478
    %v1480 = vsub.f32 %v1471, %v1479
    %v1481 = vmul.f32 %v1480, 1.442695
    %v1482 = vpow.pop %v1481
    %v1483 = vsel %vm1476, %v1482, 0.0
    %1484 = vadd.xlane.f32.xlu0 %v1483
    %v1485 = vpop.xlane.xlu0 %1484
    %v1486 = vrcp.pop %v1485
    %v1487 = vmul.f32 %v1482, %v1486
    %v1488 = vsel %vm1476, %v1487, 0.0
    %1489 = vst [vmem:[#allocation20] sm:$0xff] %v1488
    %v1490 = vpack.c.bf16 %v1487, %v1487
    %v1492 = vsel %vm1476, %v1490, 0
    %vm1494 = vcmask 1043456
    %v1496 = vsel %vm1494, %v1322, 0
    %1498 = vmatprep.subr.bf16.mxu0 0
    %1499 = vmatpush1.bf16.msra.mxu0 0
    %1500 = vmatprep.subr.bf16.mxu0 0
    %1501 = vmatpush1.bf16.msra.mxu0 0
    %1502 = vmatprep.subr.bf16.mxu0 0
    %1503 = vmatpush1.bf16.msra.mxu0 0
    %1504 = vmatprep.subr.bf16.mxu0 0
    %1505 = vmatpush1.bf16.msra.mxu0 0
    %1506 = vmatprep.subr.bf16.mxu0 0
    %1507 = vmatpush1.bf16.msra.mxu0 0
    %1508 = vmatprep.subr.bf16.mxu0 0
    %1509 = vmatpush1.bf16.msra.mxu0 0
    %1510 = vmatprep.subr.bf16.mxu0 0
    %1511 = vmatpush1.bf16.msra.mxu0 0
    %1512 = vmatprep.subr.bf16.mxu0 0
    %1513 = vmatpush1.bf16.msra.mxu0 %v1496
    %1514 = vmatprep.subr.bf16.mxu0 0
    %1515 = vmatpush2.bf16.msra.mxu0 0
    %1516 = vmatprep.subr.bf16.mxu0 0
    %1517 = vmatpush2.bf16.msra.mxu0 0
    %1518 = vmatprep.subr.bf16.mxu0 0
    %1519 = vmatpush2.bf16.msra.mxu0 0
    %1520 = vmatprep.subr.bf16.mxu0 0
    %1521 = vmatpush2.bf16.msra.mxu0 0
    %1522 = vmatprep.subr.bf16.mxu0 0
    %1523 = vmatpush2.bf16.msra.mxu0 0
    %1524 = vmatprep.subr.bf16.mxu0 0
    %1525 = vmatpush2.bf16.msra.mxu0 0
    %1526 = vmatprep.subr.bf16.mxu0 0
    %1527 = vmatpush2.bf16.msra.mxu0 0
    %1528 = vmatprep.subr.bf16.mxu0 0
    %1529 = vmatpush2.bf16.msra.mxu0 0
    %1530 = vmatprep.mubr.bf16.mxu0 0
    %1531 = vmatmul.mubr.bf16.gmra.mxu0 %v1492
    %v1532 = vpop.f32.mrf.mxu0
    %v1533 = vadd.f32 0.0, %v1532
    %v1534 = vpop.f32.mrf.mxu0
    %v1535 = vpop.f32.mrf.mxu0
    %v1536 = vpop.f32.mrf.mxu0
    %1537 = vdwg.mxu0
    %v1538 = vld [vmem:[#allocation16] sm:$0xf]
    %v1539 = vld [vmem:[#allocation16 + $0x4] sm:$0xf]
    %v1540 = vld [vmem:[#allocation16 + $0x8] sm:$0xf]
    %v1541 = vld [vmem:[#allocation16 + $0xc] sm:$0xf]
    %v1542 = vld [vmem:[#allocation16 + $0x10] sm:$0xf]
    %v1543 = vld [vmem:[#allocation16 + $0x14] sm:$0xf]
    %v1544 = vld [vmem:[#allocation16 + $0x18] sm:$0xf]
    %v1545 = vld [vmem:[#allocation16 + $0x1c] sm:$0xf]
    %v1546 = vld [vmem:[#allocation16 + $0x20] sm:$0xf]
    %v1547 = vld [vmem:[#allocation16 + $0x24] sm:$0xf]
    %v1548 = vld [vmem:[#allocation16 + $0x28] sm:$0xf]
    %v1549 = vld [vmem:[#allocation16 + $0x2c] sm:$0xf]
    %v1550 = vld [vmem:[#allocation16 + $0x30] sm:$0xf]
    %v1551 = vld [vmem:[#allocation16 + $0x34] sm:$0xf]
    %v1552 = vld [vmem:[#allocation16 + $0x38] sm:$0xf]
    %v1553 = vld [vmem:[#allocation16 + $0x3c] sm:$0xf]
    %v1554 = vpack.c.bf16 %v1533, %v1533
    %v1555 = vld [vmem:[#allocation18] sm:$0xf]
    %v1556 = vld [vmem:[#allocation18 + $0x4] sm:$0xf]
    %v1557 = vld [vmem:[#allocation18 + $0x8] sm:$0xf]
    %v1558 = vld [vmem:[#allocation18 + $0xc] sm:$0xf]
    %v1559 = vld [vmem:[#allocation18 + $0x10] sm:$0xf]
    %v1560 = vld [vmem:[#allocation18 + $0x14] sm:$0xf]
    %v1561 = vld [vmem:[#allocation18 + $0x18] sm:$0xf]
    %v1562 = vld [vmem:[#allocation18 + $0x1c] sm:$0xf]
    %v1563 = vld [vmem:[#allocation18 + $0x20] sm:$0xf]
    %v1564 = vld [vmem:[#allocation18 + $0x24] sm:$0xf]
    %v1565 = vld [vmem:[#allocation18 + $0x28] sm:$0xf]
    %v1566 = vld [vmem:[#allocation18 + $0x2c] sm:$0xf]
    %v1567 = vld [vmem:[#allocation18 + $0x30] sm:$0xf]
    %v1568 = vld [vmem:[#allocation18 + $0x34] sm:$0xf]
    %v1569 = vld [vmem:[#allocation18 + $0x38] sm:$0xf]
    %v1570 = vld [vmem:[#allocation18 + $0x3c] sm:$0xf]
    %v1587 = vunpack.c.l.b16 %v1555
    %v1588 = vunpack.c.l.b16 %v1556
    %v1589 = vunpack.c.l.b16 %v1557
    %v1590 = vunpack.c.l.b16 %v1558
    %v1591 = vunpack.c.l.b16 %v1559
    %v1592 = vunpack.c.l.b16 %v1560
    %v1593 = vunpack.c.l.b16 %v1561
    %v1594 = vunpack.c.l.b16 %v1562
    %v1595 = vunpack.c.l.b16 %v1563
    %v1596 = vunpack.c.l.b16 %v1564
    %v1597 = vunpack.c.l.b16 %v1565
    %v1598 = vunpack.c.l.b16 %v1566
    %v1599 = vunpack.c.l.b16 %v1567
    %v1600 = vunpack.c.l.b16 %v1568
    %v1601 = vunpack.c.l.b16 %v1569
    %v1602 = vunpack.c.l.b16 %v1570
    %v1603 = vpack.c.b16 %v1588, %v1587
    %v1604 = vpack.c.b16 %v1590, %v1589
    %v1605 = vpack.c.b16 %v1592, %v1591
    %v1606 = vpack.c.b16 %v1594, %v1593
    %v1607 = vpack.c.b16 %v1596, %v1595
    %v1608 = vpack.c.b16 %v1598, %v1597
    %v1609 = vpack.c.b16 %v1600, %v1599
    %v1610 = vpack.c.b16 %v1602, %v1601
    %1619 = vmatprep.subr.bf16.mxu0 0
    %1620 = vmatpush1.bf16.msra.mxu0 %v1610
    %1621 = vmatprep.subr.bf16.mxu0 0
    %1622 = vmatpush1.bf16.msra.mxu0 %v1609
    %1623 = vmatprep.subr.bf16.mxu0 0
    %1624 = vmatpush1.bf16.msra.mxu0 %v1608
    %1625 = vmatprep.subr.bf16.mxu0 0
    %1626 = vmatpush1.bf16.msra.mxu0 %v1607
    %1627 = vmatprep.subr.bf16.mxu0 0
    %1628 = vmatpush1.bf16.msra.mxu0 %v1606
    %1629 = vmatprep.subr.bf16.mxu0 0
    %1630 = vmatpush1.bf16.msra.mxu0 %v1605
    %1631 = vmatprep.subr.bf16.mxu0 0
    %1632 = vmatpush1.bf16.msra.mxu0 %v1604
    %1633 = vmatprep.subr.bf16.mxu0 0
    %1634 = vmatpush1.bf16.msra.mxu0 %v1603
    %1635 = vmatprep.subr.bf16.mxu0 0
    %1636 = vmatpush2.bf16.msra.mxu0 0
    %1637 = vmatprep.subr.bf16.mxu0 0
    %1638 = vmatpush2.bf16.msra.mxu0 0
    %1639 = vmatprep.subr.bf16.mxu0 0
    %1640 = vmatpush2.bf16.msra.mxu0 0
    %1641 = vmatprep.subr.bf16.mxu0 0
    %1642 = vmatpush2.bf16.msra.mxu0 0
    %1643 = vmatprep.subr.bf16.mxu0 0
    %1644 = vmatpush2.bf16.msra.mxu0 0
    %1645 = vmatprep.subr.bf16.mxu0 0
    %1646 = vmatpush2.bf16.msra.mxu0 0
    %1647 = vmatprep.subr.bf16.mxu0 0
    %1648 = vmatpush2.bf16.msra.mxu0 0
    %1649 = vmatprep.subr.bf16.mxu0 0
    %1650 = vmatpush2.bf16.msra.mxu0 0
    %1651 = vmatprep.mubr.bf16.mxu0 0
    %1652 = vmatmul.mubr.bf16.gmra.mxu0 %v1554
    %v1653 = vpop.f32.mrf.mxu0
    %v1654 = vadd.f32 0.0, %v1653
    %v1655 = vpop.f32.mrf.mxu0
    %v1656 = vpop.f32.mrf.mxu0
    %v1657 = vpop.f32.mrf.mxu0
    %1658 = vdwg.mxu0
    %v1675 = vunpack.c.l.b16 %v1538
    %v1676 = vunpack.c.l.b16 %v1539
    %v1677 = vunpack.c.l.b16 %v1540
    %v1678 = vunpack.c.l.b16 %v1541
    %v1679 = vunpack.c.l.b16 %v1542
    %v1680 = vunpack.c.l.b16 %v1543
    %v1681 = vunpack.c.l.b16 %v1544
    %v1682 = vunpack.c.l.b16 %v1545
    %v1683 = vunpack.c.l.b16 %v1546
    %v1684 = vunpack.c.l.b16 %v1547
    %v1685 = vunpack.c.l.b16 %v1548
    %v1686 = vunpack.c.l.b16 %v1549
    %v1687 = vunpack.c.l.b16 %v1550
    %v1688 = vunpack.c.l.b16 %v1551
    %v1689 = vunpack.c.l.b16 %v1552
    %v1690 = vunpack.c.l.b16 %v1553
    %v1691 = vpack.c.b16 %v1676, %v1675
    %v1692 = vpack.c.b16 %v1678, %v1677
    %v1693 = vpack.c.b16 %v1680, %v1679
    %v1694 = vpack.c.b16 %v1682, %v1681
    %v1695 = vpack.c.b16 %v1684, %v1683
    %v1696 = vpack.c.b16 %v1686, %v1685
    %v1697 = vpack.c.b16 %v1688, %v1687
    %v1698 = vpack.c.b16 %v1690, %v1689
    %1707 = vmatprep.subr.bf16.mxu0 0
    %1708 = vmatpush1.bf16.msra.mxu0 %v1698
    %1709 = vmatprep.subr.bf16.mxu0 0
    %1710 = vmatpush1.bf16.msra.mxu0 %v1697
    %1711 = vmatprep.subr.bf16.mxu0 0
    %1712 = vmatpush1.bf16.msra.mxu0 %v1696
    %1713 = vmatprep.subr.bf16.mxu0 0
    %1714 = vmatpush1.bf16.msra.mxu0 %v1695
    %1715 = vmatprep.subr.bf16.mxu0 0
    %1716 = vmatpush1.bf16.msra.mxu0 %v1694
    %1717 = vmatprep.subr.bf16.mxu0 0
    %1718 = vmatpush1.bf16.msra.mxu0 %v1693
    %1719 = vmatprep.subr.bf16.mxu0 0
    %1720 = vmatpush1.bf16.msra.mxu0 %v1692
    %1721 = vmatprep.subr.bf16.mxu0 0
    %1722 = vmatpush1.bf16.msra.mxu0 %v1691
    %1723 = vmatprep.subr.bf16.mxu0 0
    %1724 = vmatpush2.bf16.msra.mxu0 0
    %1725 = vmatprep.subr.bf16.mxu0 0
    %1726 = vmatpush2.bf16.msra.mxu0 0
    %1727 = vmatprep.subr.bf16.mxu0 0
    %1728 = vmatpush2.bf16.msra.mxu0 0
    %1729 = vmatprep.subr.bf16.mxu0 0
    %1730 = vmatpush2.bf16.msra.mxu0 0
    %1731 = vmatprep.subr.bf16.mxu0 0
    %1732 = vmatpush2.bf16.msra.mxu0 0
    %1733 = vmatprep.subr.bf16.mxu0 0
    %1734 = vmatpush2.bf16.msra.mxu0 0
    %1735 = vmatprep.subr.bf16.mxu0 0
    %1736 = vmatpush2.bf16.msra.mxu0 0
    %1737 = vmatprep.subr.bf16.mxu0 0
    %1738 = vmatpush2.bf16.msra.mxu0 0
    %1739 = vmatprep.mubr.bf16.mxu0 0
    %1740 = vmatmul.mubr.bf16.gmra.mxu0 %v1323
    %v1741 = vpop.f32.mrf.mxu0
    %v1742 = vadd.f32 %v1654, %v1741
    %v1743 = vpop.f32.mrf.mxu0
    %v1744 = vpop.f32.mrf.mxu0
    %v1745 = vpop.f32.mrf.mxu0
    %1746 = vdwg.mxu0
    %v1747 = vld [vmem:[%s13] sm:$0x1]
    %v1749 = vlaneseq
    %v1750 = vshrl.u32 %v1749, 7
    %v1751 = vsub.s32 0, %v1750
    %v1752 = vrot.slane %v1747, %v1751
    %v1754 = vadd.f32 %v1742, %v1752
    %1755 = vst [vmem:[#allocation19] sm:$0xff] %v1754
    // Predicated region
    $region94: #{tpu_custom_call.1} parent=1 // pred_check
      _
    $region95: #{tpu_custom_call.1} parent=1 // pred_check_branch
      %1757 = sbr.rel (0) target = $region97
    $region96: #{tpu_custom_call.1} parent=1 // pred_region
      %s1759 = ssub.s32 128, 128
      %1760 = vsyncadd [#allocation6], %s1759
      %s1762 = sshll.u32 [#allocation19], 4
      %s1763 = int_to_ptr.vmem [resolvable:$true] %s1762
      %1765 = dma.vmem_to_hbm [thread:$0]  %s1763, 128, %s14, [#allocation6]
    $region97: #{tpu_custom_call.1} parent=1 // pred_fallthru
      _
    // Predicated region
    $region98: #{tpu_custom_call.1} parent=1 // pred_check
      _
    $region99: #{tpu_custom_call.1} parent=1 // pred_check_branch
      %1767 = sbr.rel (0) target = $region101
    $region100: #{tpu_custom_call.1} parent=1 // pred_region
      %s1769 = ssub.s32 128, 128
      %1770 = vsyncadd [#allocation21], %s1769
      %s1772 = sshll.u32 [#allocation20], 4
      %s1773 = int_to_ptr.vmem [resolvable:$true] %s1772
      %1775 = dma.vmem_to_hbm [thread:$0]  %s1773, 128, %s15, [#allocation21]
    $region101: #{tpu_custom_call.1} parent=1 // pred_fallthru
      _
    // Predicated region
    $region102: #{tpu_custom_call.1} parent=1 // pred_check
      _
    $region103: #{tpu_custom_call.1} parent=1 // pred_check_branch
      %1777 = sbr.rel (0) target = $region105
    $region104: #{tpu_custom_call.1} parent=1 // pred_region
      %1778 = dma.done [#allocation6], 128
    $region105: #{tpu_custom_call.1} parent=1 // pred_fallthru
      _
    // Predicated region
    $region106: #{tpu_custom_call.1} parent=1 // pred_check
      _
    $region107: #{tpu_custom_call.1} parent=1 // pred_check_branch
      %1780 = sbr.rel (0) target = $region109
    $region108: #{tpu_custom_call.1} parent=1 // pred_region
      %1781 = dma.done [#allocation21], 128
    $region109: #{tpu_custom_call.1} parent=1 // pred_fallthru
      _
    %1782 = vsyncpa [#allocation5], 1
    %1783 = vsyncpa [#allocation8], 1
    %1784 = vsyncpa [#allocation11], 1
    %1785 = vsyncpa [#allocation14], 1
    %1786 = vsyncpa [#allocation17], 1
    %1787 = vsyncpa [#allocation6], 1
    %1788 = vsyncpa [#allocation21], 1

</llo_original>
